<compile_context>
chip_gen: v5e
topology: v5e:2x2
jax: 0.10.0
libtpu: 0.0.40
codegen_flags: <defaults>
</compile_context>

<pallas_src>
import math
import functools

import jax
import jax.numpy as jnp
from jax import lax
from jax.experimental import pallas as pl
from jax.experimental.pallas import tpu as pltpu


def _gelu_exact(x):
    # nn.GELU() default (approximate='none'): exact erf-based GELU.
    return 0.5 * x * (1.0 + lax.erf(x * (1.0 / math.sqrt(2.0))))


def _disc_kernel(ans_ref, x_ref,
                 w1a_ref, b1a_ref, w1b_ref, b1b_ref,
                 w2a_ref, b2a_ref, w2b_ref, b2b_ref,
                 w3a_ref, b3a_ref, w3bt_ref, b3b_ref,
                 loss_ref, hbuf_ref, *, batch):
    # x_ref block: (T, TB, E)   (time-major so ref[t] is a plain leading-axis index)
    # hbuf_ref   : (TB, sec)    VMEM scratch holding the flattened mlp1 output
    # loss_ref   : (TB, 1)      per-sample BCE loss (masked to 0 for padded rows)
    T = x_ref.shape[0]
    TB = hbuf_ref.shape[0]
    E8 = w1b_ref.shape[1]

    # ---- mlp1, per time-step; flatten happens by packing into the VMEM scratch ----
    w1a = w1a_ref[...]; b1a = b1a_ref[...]        # hoist weight loads out of the loop
    w1b = w1b_ref[...]; b1b = b1b_ref[...]
    for t in range(T):                            # static unroll (T is small)
        xt = x_ref[t]                             # (TB, E)
        g = _gelu_exact(jnp.dot(xt, w1a, preferred_element_type=jnp.float32) + b1a)
        p = jnp.dot(g, w1b, preferred_element_type=jnp.float32) + b1b
        hbuf_ref[:, t * E8:(t + 1) * E8] = p      # Dropout -> identity (eval mode)

    h = hbuf_ref[...]                             # (TB, sec) == torch x.view(B, -1)

    # ---- mlp2 ----
    h = _gelu_exact(jnp.dot(h, w2a_ref[...], preferred_element_type=jnp.float32) + b2a_ref[...])
    h = jnp.dot(h, w2b_ref[...], preferred_element_type=jnp.float32) + b2b_ref[...]
    # Dropout -> identity (eval mode)

    # ---- mlp3 (last N=1 layer on the VPU: broadcast-mul + lane reduce) ----
    h = _gelu_exact(jnp.dot(h, w3a_ref[...], preferred_element_type=jnp.float32) + b3a_ref[...])
    z = jnp.sum(h * w3bt_ref[...], axis=1, keepdims=True) + b3b_ref[...]   # (TB, 1) logits

    # ---- numerically stable binary_cross_entropy_with_logits (per sample) ----
    y = ans_ref[0]                                # scalar label from SMEM
    per = jnp.maximum(z, 0.0) - z * y + jnp.log(1.0 + jnp.exp(-jnp.abs(z)))
    rows = pl.program_id(0) * TB + lax.broadcasted_iota(jnp.int32, (TB, 1), 0)
    loss_ref[...] = jnp.where(rows < batch, per, 0.0)


def discriminator_forward(x, ans, params, *, row_tile=256):
    """x: (B, out_len, n_embd) float32, ans: scalar label. Returns scalar mean BCE loss."""
    B, T, E = x.shape
    E8 = E // 8
    sec = E8 * T                                   # sec_hi_len
    TB = B if B <= row_tile else row_tile          # batch row tile
    num_tiles = (B + TB - 1) // TB

    x_t = jnp.transpose(x, (1, 0, 2))              # (T, B, E): wrapper-side layout plumbing
    ans_arr = jnp.full((1,), ans, dtype=jnp.float32)
    w3bt = params["w3b"].reshape(1, -1)            # (1, th//2) row layout for the VPU layer

    weights = [params["w1a"], params["b1a"], params["w1b"], params["b1b"],
               params["w2a"], params["b2a"], params["w2b"], params["b2b"],
               params["w3a"], params["b3a"], w3bt, params["b3b"]]

    in_specs = ([pl.BlockSpec(memory_space=pltpu.MemorySpace.SMEM),       # ans (scalar path)
                 pl.BlockSpec((T, TB, E), lambda i: (0, i, 0))]           # x row tile
                + [pl.BlockSpec(w.shape, lambda i: (0, 0)) for w in weights])  # resident weights

    # Explicit VMEM budget with headroom (v5e scoped default is only 16 MiB).
    blk_bytes = 4 * (T * TB * E + TB * sec + TB) + sum(int(w.size) * 4 for w in weights)
    vmem_limit = int(min(max(2 * blk_bytes + (4 << 20), 16 << 20), 48 << 20))

    per_sample = pl.pallas_call(
        functools.partial(_disc_kernel, batch=B),
        grid=(num_tiles,),
        in_specs=in_specs,
        out_specs=pl.BlockSpec((TB, 1), lambda i: (i, 0)),
        out_shape=jax.ShapeDtypeStruct((num_tiles * TB, 1), jnp.float32),
        scratch_shapes=[pltpu.VMEM((TB, sec), jnp.float32)],
        compiler_params=pltpu.CompilerParams(
            dimension_semantics=("parallel",),
            vmem_limit_bytes=vmem_limit),
    )(ans_arr, x_t, *weights)

    # F.binary_cross_entropy_with_logits default 'mean' reduction over the batch.
    return jnp.sum(per_sample) / B


def init_params(key, n_embd, block_size):
    """Deterministic parameter init (uniform +-1/sqrt(fan_in)), weights stored (in, out)."""
    out_len = block_size - 1
    sec = (n_embd // 8) * out_len
    th = sec // 8
    dims = [
        ("1a", n_embd, n_embd // 2),
        ("1b", n_embd // 2, n_embd // 8),
        ("2a", sec, sec // 2),
        ("2b", sec // 2, sec // 8),
        ("3a", th, th // 2),
        ("3b", th // 2, 1),
    ]
    params = {}
    for name, fin, fout in dims:
        key, kw, kb = jax.random.split(key, 3)
        scale = 1.0 / math.sqrt(fin)
        params["w" + name] = jax.random.uniform(kw, (fin, fout), jnp.float32, -scale, scale)
        params["b" + name] = jax.random.uniform(kb, (1, fout), jnp.float32, -scale, scale)
    return params


def _reference_forward(x, ans, params):
    """Pure-JAX reference (eval mode) for correctness check."""
    B, T, E = x.shape
    h = x.reshape(B * T, E)
    h = _gelu_exact(h @ params["w1a"] + params["b1a"]) @ params["w1b"] + params["b1b"]
    h = h.reshape(B, -1)
    h = _gelu_exact(h @ params["w2a"] + params["b2a"]) @ params["w2b"] + params["b2b"]
    z = (_gelu_exact(h @ params["w3a"] + params["b3a"]) @ params["w3b"] + params["b3b"])[:, 0]
    y = jnp.full((B,), ans, dtype=jnp.float32)
    per = jnp.maximum(z, 0.0) - z * y + jnp.log(1.0 + jnp.exp(-jnp.abs(z)))
    return jnp.mean(per)


if __name__ == "__main__":
    # config: n_embd=32, block_size=9 -> out_len=8, sec_hi_len=32, th_hi_len=4
    n_embd, block_size, batch = 32, 9, 2
    out_len = block_size - 1

    key = jax.random.PRNGKey(0)
    kp, kx = jax.random.split(key)
    params = init_params(kp, n_embd, block_size)
    x = jax.random.normal(kx, (batch, out_len, n_embd), dtype=jnp.float32)
    ans = 1.0  # label for "real"

    loss = discriminator_forward(x, ans, params)
    jax.block_until_ready(loss)

    ref = _reference_forward(x, ans, params)
    assert jnp.allclose(loss, ref, atol=1e-5, rtol=1e-5), (loss, ref)

    print("KERNEL_OK")
</pallas_src>

<mosaic_0001>
module attributes {stable_mosaic.version = 11 : i64} {
  func.func @_disc_kernel(%arg0: i32, %arg1: memref<1xf32, #tpu.memory_space<smem>>, %arg2: memref<8x2x32xf32, #tpu.memory_space<vmem>>, %arg3: memref<32x16xf32, #tpu.memory_space<vmem>>, %arg4: memref<1x16xf32, #tpu.memory_space<vmem>>, %arg5: memref<16x4xf32, #tpu.memory_space<vmem>>, %arg6: memref<1x4xf32, #tpu.memory_space<vmem>>, %arg7: memref<32x16xf32, #tpu.memory_space<vmem>>, %arg8: memref<1x16xf32, #tpu.memory_space<vmem>>, %arg9: memref<16x4xf32, #tpu.memory_space<vmem>>, %arg10: memref<1x4xf32, #tpu.memory_space<vmem>>, %arg11: memref<4x2xf32, #tpu.memory_space<vmem>>, %arg12: memref<1x2xf32, #tpu.memory_space<vmem>>, %arg13: memref<1x2xf32, #tpu.memory_space<vmem>>, %arg14: memref<1x1xf32, #tpu.memory_space<vmem>>, %arg15: memref<2x1xf32, #tpu.memory_space<vmem>>, %arg16: memref<2x32xf32, #tpu.memory_space<vmem>>) attributes {dimension_semantics = [#tpu.dimension_semantics<parallel>], iteration_bounds = array<i64: 1>, scalar_prefetch = 0 : i64, scratch_operands = 1 : i64, tpu.core_type = #tpu.core_type<tc>, window_params = [{transform_indices = @transform_0, window_bounds = array<i64: 1>}, {transform_indices = @transform_1, window_bounds = array<i64: 8, 2, 32>}, {pipeline_mode = #tpu.pipeline_mode<synchronous>, transform_indices = @transform_2, window_bounds = array<i64: 32, 16>}, {pipeline_mode = #tpu.pipeline_mode<synchronous>, transform_indices = @transform_3, window_bounds = array<i64: 1, 16>}, {pipeline_mode = #tpu.pipeline_mode<synchronous>, transform_indices = @transform_4, window_bounds = array<i64: 16, 4>}, {pipeline_mode = #tpu.pipeline_mode<synchronous>, transform_indices = @transform_5, window_bounds = array<i64: 1, 4>}, {pipeline_mode = #tpu.pipeline_mode<synchronous>, transform_indices = @transform_6, window_bounds = array<i64: 32, 16>}, {pipeline_mode = #tpu.pipeline_mode<synchronous>, transform_indices = @transform_7, window_bounds = array<i64: 1, 16>}, {pipeline_mode = #tpu.pipeline_mode<synchronous>, transform_indices = @transform_8, window_bounds = array<i64: 16, 4>}, {pipeline_mode = #tpu.pipeline_mode<synchronous>, transform_indices = @transform_9, window_bounds = array<i64: 1, 4>}, {pipeline_mode = #tpu.pipeline_mode<synchronous>, transform_indices = @transform_10, window_bounds = array<i64: 4, 2>}, {pipeline_mode = #tpu.pipeline_mode<synchronous>, transform_indices = @transform_11, window_bounds = array<i64: 1, 2>}, {pipeline_mode = #tpu.pipeline_mode<synchronous>, transform_indices = @transform_12, window_bounds = array<i64: 1, 2>}, {pipeline_mode = #tpu.pipeline_mode<synchronous>, transform_indices = @transform_13, window_bounds = array<i64: 1, 1>}, {transform_indices = @transform_14, window_bounds = array<i64: 2, 1>}]} {
    %c0 = arith.constant 0 : index
    %c0_0 = arith.constant 0 : index
    %0 = vector.load %arg3[%c0, %c0_0] : memref<32x16xf32, #tpu.memory_space<vmem>>, vector<32x16xf32>
    %c0_1 = arith.constant 0 : index
    %c0_2 = arith.constant 0 : index
    %1 = vector.load %arg4[%c0_1, %c0_2] : memref<1x16xf32, #tpu.memory_space<vmem>>, vector<1x16xf32>
    %c0_3 = arith.constant 0 : index
    %c0_4 = arith.constant 0 : index
    %2 = vector.load %arg5[%c0_3, %c0_4] : memref<16x4xf32, #tpu.memory_space<vmem>>, vector<16x4xf32>
    %c0_5 = arith.constant 0 : index
    %c0_6 = arith.constant 0 : index
    %3 = vector.load %arg6[%c0_5, %c0_6] : memref<1x4xf32, #tpu.memory_space<vmem>>, vector<1x4xf32>
    %c0_7 = arith.constant 0 : index
    %c0_8 = arith.constant 0 : index
    %c0_9 = arith.constant 0 : index
    %4 = vector.load %arg2[%c0_7, %c0_8, %c0_9] : memref<8x2x32xf32, #tpu.memory_space<vmem>>, vector<1x2x32xf32>
    %5 = vector.shape_cast %4 : vector<1x2x32xf32> to vector<2x32xf32>
    %cst = arith.constant dense<0.000000e+00> : vector<2x16xf32>
    %6 = tpu.matmul %5, %0, %cst {dimension_numbers = #tpu.dot_dimension_numbers<[1], [0], [0], [1], [0, 0, 1, 1], [], []>} : vector<2x32xf32>, vector<32x16xf32>, vector<2x16xf32> -> vector<2x16xf32>
    %7 = vector.broadcast %1 : vector<1x16xf32> to vector<2x16xf32>
    %8 = arith.addf %6, %7 : vector<2x16xf32>
    %cst_10 = arith.constant 5.000000e-01 : f32
    %9 = vector.broadcast %cst_10 : f32 to vector<2x16xf32>
    %10 = arith.mulf %9, %8 : vector<2x16xf32>
    %cst_11 = arith.constant 0.707106769 : f32
    %11 = vector.broadcast %cst_11 : f32 to vector<2x16xf32>
    %12 = arith.mulf %8, %11 : vector<2x16xf32>
    %13 = math.erf %12 : vector<2x16xf32>
    %cst_12 = arith.constant 1.000000e+00 : f32
    %14 = vector.broadcast %cst_12 : f32 to vector<2x16xf32>
    %15 = arith.addf %14, %13 : vector<2x16xf32>
    %16 = arith.mulf %10, %15 : vector<2x16xf32>
    %cst_13 = arith.constant dense<0.000000e+00> : vector<2x4xf32>
    %17 = tpu.matmul %16, %2, %cst_13 {dimension_numbers = #tpu.dot_dimension_numbers<[1], [0], [0], [1], [0, 0, 1, 1], [], []>} : vector<2x16xf32>, vector<16x4xf32>, vector<2x4xf32> -> vector<2x4xf32>
    %18 = vector.broadcast %3 : vector<1x4xf32> to vector<2x4xf32>
    %19 = arith.addf %17, %18 : vector<2x4xf32>
    %c0_14 = arith.constant 0 : index
    %c0_15 = arith.constant 0 : index
    %20 = vector.load %arg16[%c0_14, %c0_15] : memref<2x32xf32, #tpu.memory_space<vmem>>, vector<2x4xf32>
    tpu.vector_store %arg16[%c0_14, %c0_15], %19 {strides = array<i32>} : memref<2x32xf32, #tpu.memory_space<vmem>>, vector<2x4xf32>,
    %c1 = arith.constant 1 : index
    %c0_16 = arith.constant 0 : index
    %c0_17 = arith.constant 0 : index
    %21 = vector.load %arg2[%c1, %c0_16, %c0_17] : memref<8x2x32xf32, #tpu.memory_space<vmem>>, vector<1x2x32xf32>
    %22 = vector.shape_cast %21 : vector<1x2x32xf32> to vector<2x32xf32>
    %cst_18 = arith.constant dense<0.000000e+00> : vector<2x16xf32>
    %23 = tpu.matmul %22, %0, %cst_18 {dimension_numbers = #tpu.dot_dimension_numbers<[1], [0], [0], [1], [0, 0, 1, 1], [], []>} : vector<2x32xf32>, vector<32x16xf32>, vector<2x16xf32> -> vector<2x16xf32>
    %24 = vector.broadcast %1 : vector<1x16xf32> to vector<2x16xf32>
    %25 = arith.addf %23, %24 : vector<2x16xf32>
    %cst_19 = arith.constant 5.000000e-01 : f32
    %26 = vector.broadcast %cst_19 : f32 to vector<2x16xf32>
    %27 = arith.mulf %26, %25 : vector<2x16xf32>
    %cst_20 = arith.constant 0.707106769 : f32
    %28 = vector.broadcast %cst_20 : f32 to vector<2x16xf32>
    %29 = arith.mulf %25, %28 : vector<2x16xf32>
    %30 = math.erf %29 : vector<2x16xf32>
    %cst_21 = arith.constant 1.000000e+00 : f32
    %31 = vector.broadcast %cst_21 : f32 to vector<2x16xf32>
    %32 = arith.addf %31, %30 : vector<2x16xf32>
    %33 = arith.mulf %27, %32 : vector<2x16xf32>
    %cst_22 = arith.constant dense<0.000000e+00> : vector<2x4xf32>
    %34 = tpu.matmul %33, %2, %cst_22 {dimension_numbers = #tpu.dot_dimension_numbers<[1], [0], [0], [1], [0, 0, 1, 1], [], []>} : vector<2x16xf32>, vector<16x4xf32>, vector<2x4xf32> -> vector<2x4xf32>
    %35 = vector.broadcast %3 : vector<1x4xf32> to vector<2x4xf32>
    %36 = arith.addf %34, %35 : vector<2x4xf32>
    %c0_23 = arith.constant 0 : index
    %c4 = arith.constant 4 : index
    %37 = vector.load %arg16[%c0_23, %c4] : memref<2x32xf32, #tpu.memory_space<vmem>>, vector<2x4xf32>
    tpu.vector_store %arg16[%c0_23, %c4], %36 {strides = array<i32>} : memref<2x32xf32, #tpu.memory_space<vmem>>, vector<2x4xf32>,
    %c2 = arith.constant 2 : index
    %c0_24 = arith.constant 0 : index
    %c0_25 = arith.constant 0 : index
    %38 = vector.load %arg2[%c2, %c0_24, %c0_25] : memref<8x2x32xf32, #tpu.memory_space<vmem>>, vector<1x2x32xf32>
    %39 = vector.shape_cast %38 : vector<1x2x32xf32> to vector<2x32xf32>
    %cst_26 = arith.constant dense<0.000000e+00> : vector<2x16xf32>
    %40 = tpu.matmul %39, %0, %cst_26 {dimension_numbers = #tpu.dot_dimension_numbers<[1], [0], [0], [1], [0, 0, 1, 1], [], []>} : vector<2x32xf32>, vector<32x16xf32>, vector<2x16xf32> -> vector<2x16xf32>
    %41 = vector.broadcast %1 : vector<1x16xf32> to vector<2x16xf32>
    %42 = arith.addf %40, %41 : vector<2x16xf32>
    %cst_27 = arith.constant 5.000000e-01 : f32
    %43 = vector.broadcast %cst_27 : f32 to vector<2x16xf32>
    %44 = arith.mulf %43, %42 : vector<2x16xf32>
    %cst_28 = arith.constant 0.707106769 : f32
    %45 = vector.broadcast %cst_28 : f32 to vector<2x16xf32>
    %46 = arith.mulf %42, %45 : vector<2x16xf32>
    %47 = math.erf %46 : vector<2x16xf32>
    %cst_29 = arith.constant 1.000000e+00 : f32
    %48 = vector.broadcast %cst_29 : f32 to vector<2x16xf32>
    %49 = arith.addf %48, %47 : vector<2x16xf32>
    %50 = arith.mulf %44, %49 : vector<2x16xf32>
    %cst_30 = arith.constant dense<0.000000e+00> : vector<2x4xf32>
    %51 = tpu.matmul %50, %2, %cst_30 {dimension_numbers = #tpu.dot_dimension_numbers<[1], [0], [0], [1], [0, 0, 1, 1], [], []>} : vector<2x16xf32>, vector<16x4xf32>, vector<2x4xf32> -> vector<2x4xf32>
    %52 = vector.broadcast %3 : vector<1x4xf32> to vector<2x4xf32>
    %53 = arith.addf %51, %52 : vector<2x4xf32>
    %c0_31 = arith.constant 0 : index
    %c8 = arith.constant 8 : index
    %54 = vector.load %arg16[%c0_31, %c8] : memref<2x32xf32, #tpu.memory_space<vmem>>, vector<2x4xf32>
    tpu.vector_store %arg16[%c0_31, %c8], %53 {strides = array<i32>} : memref<2x32xf32, #tpu.memory_space<vmem>>, vector<2x4xf32>,
    %c3 = arith.constant 3 : index
    %c0_32 = arith.constant 0 : index
    %c0_33 = arith.constant 0 : index
    %55 = vector.load %arg2[%c3, %c0_32, %c0_33] : memref<8x2x32xf32, #tpu.memory_space<vmem>>, vector<1x2x32xf32>
    %56 = vector.shape_cast %55 : vector<1x2x32xf32> to vector<2x32xf32>
    %cst_34 = arith.constant dense<0.000000e+00> : vector<2x16xf32>
    %57 = tpu.matmul %56, %0, %cst_34 {dimension_numbers = #tpu.dot_dimension_numbers<[1], [0], [0], [1], [0, 0, 1, 1], [], []>} : vector<2x32xf32>, vector<32x16xf32>, vector<2x16xf32> -> vector<2x16xf32>
    %58 = vector.broadcast %1 : vector<1x16xf32> to vector<2x16xf32>
    %59 = arith.addf %57, %58 : vector<2x16xf32>
    %cst_35 = arith.constant 5.000000e-01 : f32
    %60 = vector.broadcast %cst_35 : f32 to vector<2x16xf32>
    %61 = arith.mulf %60, %59 : vector<2x16xf32>
    %cst_36 = arith.constant 0.707106769 : f32
    %62 = vector.broadcast %cst_36 : f32 to vector<2x16xf32>
    %63 = arith.mulf %59, %62 : vector<2x16xf32>
    %64 = math.erf %63 : vector<2x16xf32>
    %cst_37 = arith.constant 1.000000e+00 : f32
    %65 = vector.broadcast %cst_37 : f32 to vector<2x16xf32>
    %66 = arith.addf %65, %64 : vector<2x16xf32>
    %67 = arith.mulf %61, %66 : vector<2x16xf32>
    %cst_38 = arith.constant dense<0.000000e+00> : vector<2x4xf32>
    %68 = tpu.matmul %67, %2, %cst_38 {dimension_numbers = #tpu.dot_dimension_numbers<[1], [0], [0], [1], [0, 0, 1, 1], [], []>} : vector<2x16xf32>, vector<16x4xf32>, vector<2x4xf32> -> vector<2x4xf32>
    %69 = vector.broadcast %3 : vector<1x4xf32> to vector<2x4xf32>
    %70 = arith.addf %68, %69 : vector<2x4xf32>
    %c0_39 = arith.constant 0 : index
    %c12 = arith.constant 12 : index
    %71 = vector.load %arg16[%c0_39, %c12] : memref<2x32xf32, #tpu.memory_space<vmem>>, vector<2x4xf32>
    tpu.vector_store %arg16[%c0_39, %c12], %70 {strides = array<i32>} : memref<2x32xf32, #tpu.memory_space<vmem>>, vector<2x4xf32>,
    %c4_40 = arith.constant 4 : index
    %c0_41 = arith.constant 0 : index
    %c0_42 = arith.constant 0 : index
    %72 = vector.load %arg2[%c4_40, %c0_41, %c0_42] : memref<8x2x32xf32, #tpu.memory_space<vmem>>, vector<1x2x32xf32>
    %73 = vector.shape_cast %72 : vector<1x2x32xf32> to vector<2x32xf32>
    %cst_43 = arith.constant dense<0.000000e+00> : vector<2x16xf32>
    %74 = tpu.matmul %73, %0, %cst_43 {dimension_numbers = #tpu.dot_dimension_numbers<[1], [0], [0], [1], [0, 0, 1, 1], [], []>} : vector<2x32xf32>, vector<32x16xf32>, vector<2x16xf32> -> vector<2x16xf32>
    %75 = vector.broadcast %1 : vector<1x16xf32> to vector<2x16xf32>
    %76 = arith.addf %74, %75 : vector<2x16xf32>
    %cst_44 = arith.constant 5.000000e-01 : f32
    %77 = vector.broadcast %cst_44 : f32 to vector<2x16xf32>
    %78 = arith.mulf %77, %76 : vector<2x16xf32>
    %cst_45 = arith.constant 0.707106769 : f32
    %79 = vector.broadcast %cst_45 : f32 to vector<2x16xf32>
    %80 = arith.mulf %76, %79 : vector<2x16xf32>
    %81 = math.erf %80 : vector<2x16xf32>
    %cst_46 = arith.constant 1.000000e+00 : f32
    %82 = vector.broadcast %cst_46 : f32 to vector<2x16xf32>
    %83 = arith.addf %82, %81 : vector<2x16xf32>
    %84 = arith.mulf %78, %83 : vector<2x16xf32>
    %cst_47 = arith.constant dense<0.000000e+00> : vector<2x4xf32>
    %85 = tpu.matmul %84, %2, %cst_47 {dimension_numbers = #tpu.dot_dimension_numbers<[1], [0], [0], [1], [0, 0, 1, 1], [], []>} : vector<2x16xf32>, vector<16x4xf32>, vector<2x4xf32> -> vector<2x4xf32>
    %86 = vector.broadcast %3 : vector<1x4xf32> to vector<2x4xf32>
    %87 = arith.addf %85, %86 : vector<2x4xf32>
    %c0_48 = arith.constant 0 : index
    %c16 = arith.constant 16 : index
    %88 = vector.load %arg16[%c0_48, %c16] : memref<2x32xf32, #tpu.memory_space<vmem>>, vector<2x4xf32>
    tpu.vector_store %arg16[%c0_48, %c16], %87 {strides = array<i32>} : memref<2x32xf32, #tpu.memory_space<vmem>>, vector<2x4xf32>,
    %c5 = arith.constant 5 : index
    %c0_49 = arith.constant 0 : index
    %c0_50 = arith.constant 0 : index
    %89 = vector.load %arg2[%c5, %c0_49, %c0_50] : memref<8x2x32xf32, #tpu.memory_space<vmem>>, vector<1x2x32xf32>
    %90 = vector.shape_cast %89 : vector<1x2x32xf32> to vector<2x32xf32>
    %cst_51 = arith.constant dense<0.000000e+00> : vector<2x16xf32>
    %91 = tpu.matmul %90, %0, %cst_51 {dimension_numbers = #tpu.dot_dimension_numbers<[1], [0], [0], [1], [0, 0, 1, 1], [], []>} : vector<2x32xf32>, vector<32x16xf32>, vector<2x16xf32> -> vector<2x16xf32>
    %92 = vector.broadcast %1 : vector<1x16xf32> to vector<2x16xf32>
    %93 = arith.addf %91, %92 : vector<2x16xf32>
    %cst_52 = arith.constant 5.000000e-01 : f32
    %94 = vector.broadcast %cst_52 : f32 to vector<2x16xf32>
    %95 = arith.mulf %94, %93 : vector<2x16xf32>
    %cst_53 = arith.constant 0.707106769 : f32
    %96 = vector.broadcast %cst_53 : f32 to vector<2x16xf32>
    %97 = arith.mulf %93, %96 : vector<2x16xf32>
    %98 = math.erf %97 : vector<2x16xf32>
    %cst_54 = arith.constant 1.000000e+00 : f32
    %99 = vector.broadcast %cst_54 : f32 to vector<2x16xf32>
    %100 = arith.addf %99, %98 : vector<2x16xf32>
    %101 = arith.mulf %95, %100 : vector<2x16xf32>
    %cst_55 = arith.constant dense<0.000000e+00> : vector<2x4xf32>
    %102 = tpu.matmul %101, %2, %cst_55 {dimension_numbers = #tpu.dot_dimension_numbers<[1], [0], [0], [1], [0, 0, 1, 1], [], []>} : vector<2x16xf32>, vector<16x4xf32>, vector<2x4xf32> -> vector<2x4xf32>
    %103 = vector.broadcast %3 : vector<1x4xf32> to vector<2x4xf32>
    %104 = arith.addf %102, %103 : vector<2x4xf32>
    %c0_56 = arith.constant 0 : index
    %c20 = arith.constant 20 : index
    %105 = vector.load %arg16[%c0_56, %c20] : memref<2x32xf32, #tpu.memory_space<vmem>>, vector<2x4xf32>
    tpu.vector_store %arg16[%c0_56, %c20], %104 {strides = array<i32>} : memref<2x32xf32, #tpu.memory_space<vmem>>, vector<2x4xf32>,
    %c6 = arith.constant 6 : index
    %c0_57 = arith.constant 0 : index
    %c0_58 = arith.constant 0 : index
    %106 = vector.load %arg2[%c6, %c0_57, %c0_58] : memref<8x2x32xf32, #tpu.memory_space<vmem>>, vector<1x2x32xf32>
    %107 = vector.shape_cast %106 : vector<1x2x32xf32> to vector<2x32xf32>
    %cst_59 = arith.constant dense<0.000000e+00> : vector<2x16xf32>
    %108 = tpu.matmul %107, %0, %cst_59 {dimension_numbers = #tpu.dot_dimension_numbers<[1], [0], [0], [1], [0, 0, 1, 1], [], []>} : vector<2x32xf32>, vector<32x16xf32>, vector<2x16xf32> -> vector<2x16xf32>
    %109 = vector.broadcast %1 : vector<1x16xf32> to vector<2x16xf32>
    %110 = arith.addf %108, %109 : vector<2x16xf32>
    %cst_60 = arith.constant 5.000000e-01 : f32
    %111 = vector.broadcast %cst_60 : f32 to vector<2x16xf32>
    %112 = arith.mulf %111, %110 : vector<2x16xf32>
    %cst_61 = arith.constant 0.707106769 : f32
    %113 = vector.broadcast %cst_61 : f32 to vector<2x16xf32>
    %114 = arith.mulf %110, %113 : vector<2x16xf32>
    %115 = math.erf %114 : vector<2x16xf32>
    %cst_62 = arith.constant 1.000000e+00 : f32
    %116 = vector.broadcast %cst_62 : f32 to vector<2x16xf32>
    %117 = arith.addf %116, %115 : vector<2x16xf32>
    %118 = arith.mulf %112, %117 : vector<2x16xf32>
    %cst_63 = arith.constant dense<0.000000e+00> : vector<2x4xf32>
    %119 = tpu.matmul %118, %2, %cst_63 {dimension_numbers = #tpu.dot_dimension_numbers<[1], [0], [0], [1], [0, 0, 1, 1], [], []>} : vector<2x16xf32>, vector<16x4xf32>, vector<2x4xf32> -> vector<2x4xf32>
    %120 = vector.broadcast %3 : vector<1x4xf32> to vector<2x4xf32>
    %121 = arith.addf %119, %120 : vector<2x4xf32>
    %c0_64 = arith.constant 0 : index
    %c24 = arith.constant 24 : index
    %122 = vector.load %arg16[%c0_64, %c24] : memref<2x32xf32, #tpu.memory_space<vmem>>, vector<2x4xf32>
    tpu.vector_store %arg16[%c0_64, %c24], %121 {strides = array<i32>} : memref<2x32xf32, #tpu.memory_space<vmem>>, vector<2x4xf32>,
    %c7 = arith.constant 7 : index
    %c0_65 = arith.constant 0 : index
    %c0_66 = arith.constant 0 : index
    %123 = vector.load %arg2[%c7, %c0_65, %c0_66] : memref<8x2x32xf32, #tpu.memory_space<vmem>>, vector<1x2x32xf32>
    %124 = vector.shape_cast %123 : vector<1x2x32xf32> to vector<2x32xf32>
    %cst_67 = arith.constant dense<0.000000e+00> : vector<2x16xf32>
    %125 = tpu.matmul %124, %0, %cst_67 {dimension_numbers = #tpu.dot_dimension_numbers<[1], [0], [0], [1], [0, 0, 1, 1], [], []>} : vector<2x32xf32>, vector<32x16xf32>, vector<2x16xf32> -> vector<2x16xf32>
    %126 = vector.broadcast %1 : vector<1x16xf32> to vector<2x16xf32>
    %127 = arith.addf %125, %126 : vector<2x16xf32>
    %cst_68 = arith.constant 5.000000e-01 : f32
    %128 = vector.broadcast %cst_68 : f32 to vector<2x16xf32>
    %129 = arith.mulf %128, %127 : vector<2x16xf32>
    %cst_69 = arith.constant 0.707106769 : f32
    %130 = vector.broadcast %cst_69 : f32 to vector<2x16xf32>
    %131 = arith.mulf %127, %130 : vector<2x16xf32>
    %132 = math.erf %131 : vector<2x16xf32>
    %cst_70 = arith.constant 1.000000e+00 : f32
    %133 = vector.broadcast %cst_70 : f32 to vector<2x16xf32>
    %134 = arith.addf %133, %132 : vector<2x16xf32>
    %135 = arith.mulf %129, %134 : vector<2x16xf32>
    %cst_71 = arith.constant dense<0.000000e+00> : vector<2x4xf32>
    %136 = tpu.matmul %135, %2, %cst_71 {dimension_numbers = #tpu.dot_dimension_numbers<[1], [0], [0], [1], [0, 0, 1, 1], [], []>} : vector<2x16xf32>, vector<16x4xf32>, vector<2x4xf32> -> vector<2x4xf32>
    %137 = vector.broadcast %3 : vector<1x4xf32> to vector<2x4xf32>
    %138 = arith.addf %136, %137 : vector<2x4xf32>
    %c0_72 = arith.constant 0 : index
    %c28 = arith.constant 28 : index
    %139 = vector.load %arg16[%c0_72, %c28] : memref<2x32xf32, #tpu.memory_space<vmem>>, vector<2x4xf32>
    tpu.vector_store %arg16[%c0_72, %c28], %138 {strides = array<i32>} : memref<2x32xf32, #tpu.memory_space<vmem>>, vector<2x4xf32>,
    %c0_73 = arith.constant 0 : index
    %c0_74 = arith.constant 0 : index
    %140 = vector.load %arg16[%c0_73, %c0_74] : memref<2x32xf32, #tpu.memory_space<vmem>>, vector<2x32xf32>
    %c0_75 = arith.constant 0 : index
    %c0_76 = arith.constant 0 : index
    %141 = vector.load %arg7[%c0_75, %c0_76] : memref<32x16xf32, #tpu.memory_space<vmem>>, vector<32x16xf32>
    %cst_77 = arith.constant dense<0.000000e+00> : vector<2x16xf32>
    %142 = tpu.matmul %140, %141, %cst_77 {dimension_numbers = #tpu.dot_dimension_numbers<[1], [0], [0], [1], [0, 0, 1, 1], [], []>} : vector<2x32xf32>, vector<32x16xf32>, vector<2x16xf32> -> vector<2x16xf32>
    %c0_78 = arith.constant 0 : index
    %c0_79 = arith.constant 0 : index
    %143 = vector.load %arg8[%c0_78, %c0_79] : memref<1x16xf32, #tpu.memory_space<vmem>>, vector<1x16xf32>
    %144 = vector.broadcast %143 : vector<1x16xf32> to vector<2x16xf32>
    %145 = arith.addf %142, %144 : vector<2x16xf32>
    %cst_80 = arith.constant 5.000000e-01 : f32
    %146 = vector.broadcast %cst_80 : f32 to vector<2x16xf32>
    %147 = arith.mulf %146, %145 : vector<2x16xf32>
    %cst_81 = arith.constant 0.707106769 : f32
    %148 = vector.broadcast %cst_81 : f32 to vector<2x16xf32>
    %149 = arith.mulf %145, %148 : vector<2x16xf32>
    %150 = math.erf %149 : vector<2x16xf32>
    %cst_82 = arith.constant 1.000000e+00 : f32
    %151 = vector.broadcast %cst_82 : f32 to vector<2x16xf32>
    %152 = arith.addf %151, %150 : vector<2x16xf32>
    %153 = arith.mulf %147, %152 : vector<2x16xf32>
    %c0_83 = arith.constant 0 : index
    %c0_84 = arith.constant 0 : index
    %154 = vector.load %arg9[%c0_83, %c0_84] : memref<16x4xf32, #tpu.memory_space<vmem>>, vector<16x4xf32>
    %cst_85 = arith.constant dense<0.000000e+00> : vector<2x4xf32>
    %155 = tpu.matmul %153, %154, %cst_85 {dimension_numbers = #tpu.dot_dimension_numbers<[1], [0], [0], [1], [0, 0, 1, 1], [], []>} : vector<2x16xf32>, vector<16x4xf32>, vector<2x4xf32> -> vector<2x4xf32>
    %c0_86 = arith.constant 0 : index
    %c0_87 = arith.constant 0 : index
    %156 = vector.load %arg10[%c0_86, %c0_87] : memref<1x4xf32, #tpu.memory_space<vmem>>, vector<1x4xf32>
    %157 = vector.broadcast %156 : vector<1x4xf32> to vector<2x4xf32>
    %158 = arith.addf %155, %157 : vector<2x4xf32>
    %c0_88 = arith.constant 0 : index
    %c0_89 = arith.constant 0 : index
    %159 = vector.load %arg11[%c0_88, %c0_89] : memref<4x2xf32, #tpu.memory_space<vmem>>, vector<4x2xf32>
    %cst_90 = arith.constant dense<0.000000e+00> : vector<2x2xf32>
    %160 = tpu.matmul %158, %159, %cst_90 {dimension_numbers = #tpu.dot_dimension_numbers<[1], [0], [0], [1], [0, 0, 1, 1], [], []>} : vector<2x4xf32>, vector<4x2xf32>, vector<2x2xf32> -> vector<2x2xf32>
    %c0_91 = arith.constant 0 : index
    %c0_92 = arith.constant 0 : index
    %161 = vector.load %arg12[%c0_91, %c0_92] : memref<1x2xf32, #tpu.memory_space<vmem>>, vector<1x2xf32>
    %162 = vector.broadcast %161 : vector<1x2xf32> to vector<2x2xf32>
    %163 = arith.addf %160, %162 : vector<2x2xf32>
    %cst_93 = arith.constant 5.000000e-01 : f32
    %164 = vector.broadcast %cst_93 : f32 to vector<2x2xf32>
    %165 = arith.mulf %164, %163 : vector<2x2xf32>
    %cst_94 = arith.constant 0.707106769 : f32
    %166 = vector.broadcast %cst_94 : f32 to vector<2x2xf32>
    %167 = arith.mulf %163, %166 : vector<2x2xf32>
    %168 = math.erf %167 : vector<2x2xf32>
    %cst_95 = arith.constant 1.000000e+00 : f32
    %169 = vector.broadcast %cst_95 : f32 to vector<2x2xf32>
    %170 = arith.addf %169, %168 : vector<2x2xf32>
    %171 = arith.mulf %165, %170 : vector<2x2xf32>
    %c0_96 = arith.constant 0 : index
    %c0_97 = arith.constant 0 : index
    %172 = vector.load %arg13[%c0_96, %c0_97] : memref<1x2xf32, #tpu.memory_space<vmem>>, vector<1x2xf32>
    %173 = vector.broadcast %172 : vector<1x2xf32> to vector<2x2xf32>
    %174 = arith.mulf %171, %173 : vector<2x2xf32>
    %cst_98 = arith.constant dense<0.000000e+00> : vector<2xf32>
    %175 = vector.multi_reduction <add>, %174, %cst_98 [1] : vector<2x2xf32> to vector<2xf32>
    %176 = vector.shape_cast %175 : vector<2xf32> to vector<2x1xf32>
    %c0_99 = arith.constant 0 : index
    %c0_100 = arith.constant 0 : index
    %177 = vector.load %arg14[%c0_99, %c0_100] : memref<1x1xf32, #tpu.memory_space<vmem>>, vector<1x1xf32>
    %178 = vector.broadcast %177 : vector<1x1xf32> to vector<2x1xf32>
    %179 = arith.addf %176, %178 : vector<2x1xf32>
    %c0_101 = arith.constant 0 : index
    %180 = memref.load %arg1[%c0_101] : memref<1xf32, #tpu.memory_space<smem>>
    %cst_102 = arith.constant 0.000000e+00 : f32
    %181 = vector.broadcast %cst_102 : f32 to vector<2x1xf32>
    %182 = arith.maximumf %179, %181 : vector<2x1xf32>
    %183 = vector.broadcast %180 : f32 to vector<2x1xf32>
    %184 = arith.mulf %179, %183 : vector<2x1xf32>
    %185 = arith.subf %182, %184 : vector<2x1xf32>
    %186 = math.absf %179 : vector<2x1xf32>
    %cst_103 = arith.constant 0.000000e+00 : f32
    %187 = vector.broadcast %cst_103 : f32 to vector<2x1xf32>
    %188 = arith.subf %187, %186 : vector<2x1xf32>
    %189 = math.exp %188 : vector<2x1xf32>
    %cst_104 = arith.constant 1.000000e+00 : f32
    %190 = vector.broadcast %cst_104 : f32 to vector<2x1xf32>
    %191 = arith.addf %190, %189 : vector<2x1xf32>
    %192 = math.log %191 : vector<2x1xf32>
    %193 = arith.addf %185, %192 : vector<2x1xf32>
    %c2_i32 = arith.constant 2 : i32
    %194 = arith.muli %arg0, %c2_i32 : i32
    %195 = tpu.iota {dimensions = array<i32: 0>} : vector<2x1xi32>
    %196 = vector.broadcast %194 : i32 to vector<2x1xi32>
    %197 = arith.addi %196, %195 : vector<2x1xi32>
    %c2_i32_105 = arith.constant 2 : i32
    %198 = vector.broadcast %c2_i32_105 : i32 to vector<2x1xi32>
    %199 = arith.cmpi slt, %197, %198 : vector<2x1xi32>
    %cst_106 = arith.constant 0.000000e+00 : f32
    %200 = vector.broadcast %cst_106 : f32 to vector<2x1xf32>
    %201 = arith.select %199, %193, %200 : vector<2x1xi1>, vector<2x1xf32>
    %c0_107 = arith.constant 0 : index
    %c0_108 = arith.constant 0 : index
    %202 = vector.load %arg15[%c0_107, %c0_108] : memref<2x1xf32, #tpu.memory_space<vmem>>, vector<2x1xf32>
    tpu.vector_store %arg15[%c0_107, %c0_108], %201 {strides = array<i32>} : memref<2x1xf32, #tpu.memory_space<vmem>>, vector<2x1xf32>,
    return
  }
  func.func @transform_0(%arg0: i32) -> i32 {
    %c0_i32 = arith.constant 0 : i32
    %c0_i32_0 = arith.constant 0 : i32
    return %c0_i32 : i32
  }
  func.func @transform_1(%arg0: i32) -> (i32, i32, i32) {
    %c0_i32 = arith.constant 0 : i32
    %c0_i32_0 = arith.constant 0 : i32
    %c0_i32_1 = arith.constant 0 : i32
    return %c0_i32, %arg0, %c0_i32_0 : i32, i32, i32
  }
  func.func @transform_2(%arg0: i32) -> (i32, i32) {
    %c0_i32 = arith.constant 0 : i32
    %c0_i32_0 = arith.constant 0 : i32
    %c0_i32_1 = arith.constant 0 : i32
    return %c0_i32, %c0_i32_0 : i32, i32
  }
  func.func @transform_3(%arg0: i32) -> (i32, i32) {
    %c0_i32 = arith.constant 0 : i32
    %c0_i32_0 = arith.constant 0 : i32
    %c0_i32_1 = arith.constant 0 : i32
    return %c0_i32, %c0_i32_0 : i32, i32
  }
  func.func @transform_4(%arg0: i32) -> (i32, i32) {
    %c0_i32 = arith.constant 0 : i32
    %c0_i32_0 = arith.constant 0 : i32
    %c0_i32_1 = arith.constant 0 : i32
    return %c0_i32, %c0_i32_0 : i32, i32
  }
  func.func @transform_5(%arg0: i32) -> (i32, i32) {
    %c0_i32 = arith.constant 0 : i32
    %c0_i32_0 = arith.constant 0 : i32
    %c0_i32_1 = arith.constant 0 : i32
    return %c0_i32, %c0_i32_0 : i32, i32
  }
  func.func @transform_6(%arg0: i32) -> (i32, i32) {
    %c0_i32 = arith.constant 0 : i32
    %c0_i32_0 = arith.constant 0 : i32
    %c0_i32_1 = arith.constant 0 : i32
    return %c0_i32, %c0_i32_0 : i32, i32
  }
  func.func @transform_7(%arg0: i32) -> (i32, i32) {
    %c0_i32 = arith.constant 0 : i32
    %c0_i32_0 = arith.constant 0 : i32
    %c0_i32_1 = arith.constant 0 : i32
    return %c0_i32, %c0_i32_0 : i32, i32
  }
  func.func @transform_8(%arg0: i32) -> (i32, i32) {
    %c0_i32 = arith.constant 0 : i32
    %c0_i32_0 = arith.constant 0 : i32
    %c0_i32_1 = arith.constant 0 : i32
    return %c0_i32, %c0_i32_0 : i32, i32
  }
  func.func @transform_9(%arg0: i32) -> (i32, i32) {
    %c0_i32 = arith.constant 0 : i32
    %c0_i32_0 = arith.constant 0 : i32
    %c0_i32_1 = arith.constant 0 : i32
    return %c0_i32, %c0_i32_0 : i32, i32
  }
  func.func @transform_10(%arg0: i32) -> (i32, i32) {
    %c0_i32 = arith.constant 0 : i32
    %c0_i32_0 = arith.constant 0 : i32
    %c0_i32_1 = arith.constant 0 : i32
    return %c0_i32, %c0_i32_0 : i32, i32
  }
  func.func @transform_11(%arg0: i32) -> (i32, i32) {
    %c0_i32 = arith.constant 0 : i32
    %c0_i32_0 = arith.constant 0 : i32
    %c0_i32_1 = arith.constant 0 : i32
    return %c0_i32, %c0_i32_0 : i32, i32
  }
  func.func @transform_12(%arg0: i32) -> (i32, i32) {
    %c0_i32 = arith.constant 0 : i32
    %c0_i32_0 = arith.constant 0 : i32
    %c0_i32_1 = arith.constant 0 : i32
    return %c0_i32, %c0_i32_0 : i32, i32
  }
  func.func @transform_13(%arg0: i32) -> (i32, i32) {
    %c0_i32 = arith.constant 0 : i32
    %c0_i32_0 = arith.constant 0 : i32
    %c0_i32_1 = arith.constant 0 : i32
    return %c0_i32, %c0_i32_0 : i32, i32
  }
  func.func @transform_14(%arg0: i32) -> (i32, i32) {
    %c0_i32 = arith.constant 0 : i32
    %c0_i32_0 = arith.constant 0 : i32
    return %arg0, %c0_i32 : i32, i32
  }
}

</mosaic_0001>

<llo_original>
// kernel: tpu_custom_call.1
$region0: #{tpu_custom_call.1}
  #allocation0 [shape = 'u32[]', space=smem, size = 0x4, offset = 0x4, fixed_abs, tag = 'smem constant byte address 0x4 - core index']
  #allocation1 [shape = 'u32[72,128]{1,0:T(1,128)}', space=vmem, size = 0x9000, scoped, tag = 'internal scratch']
  #allocation2 [shape = 'f32[2,32]{1,0:T(2,128)}', space=vmem, size = 0x400, scoped, tag = 'scratch operand']
  #allocation3 [shape = 'f32[1]{0:T(128)S(6)}', space=smem, size = 0x200, scoped, tag = 'scoped memory for tpu_custom_call.1']
  #allocation4 [shape = 'f32[1,1]{1,0:T(1,128)S(1)}', space=vmem, size = 0x200, scoped, tag = 'scoped memory for tpu_custom_call.1']
  %s0 = inlined_call_operand.<no memory space> [shape: f32[1], index: 0, kind: input, shape index: {}]
  %s1 = inlined_call_operand.vmem [shape: f32[8,2,32], index: 1, kind: input, shape index: {}]
  %s2 = inlined_call_operand.vmem [shape: f32[32,16], index: 2, kind: input, shape index: {}]
  %s3 = inlined_call_operand.vmem [shape: f32[1,16], index: 3, kind: input, shape index: {}]
  %s4 = inlined_call_operand.vmem [shape: f32[16,4], index: 4, kind: input, shape index: {}]
  %s5 = inlined_call_operand.vmem [shape: f32[1,4], index: 5, kind: input, shape index: {}]
  %s6 = inlined_call_operand.vmem [shape: f32[32,16], index: 6, kind: input, shape index: {}]
  %s7 = inlined_call_operand.vmem [shape: f32[1,16], index: 7, kind: input, shape index: {}]
  %s8 = inlined_call_operand.vmem [shape: f32[16,4], index: 8, kind: input, shape index: {}]
  %s9 = inlined_call_operand.vmem [shape: f32[1,4], index: 9, kind: input, shape index: {}]
  %s10 = inlined_call_operand.vmem [shape: f32[4,2], index: 10, kind: input, shape index: {}]
  %s11 = inlined_call_operand.vmem [shape: f32[1,2], index: 11, kind: input, shape index: {}]
  %s12 = inlined_call_operand.vmem [shape: f32[1,2], index: 12, kind: input, shape index: {}]
  %s13 = inlined_call_operand.<no memory space> [shape: f32[1,1], index: 13, kind: input, shape index: {}]
  %s14 = inlined_call_operand.vmem [shape: f32[2,1], index: 14, kind: output, shape index: {}]
  %s15 = sld [smem:[#allocation0]]
  $region66: #{tpu_custom_call.1} parent=0
    _
  %s17 = ssub.s32 1, %s15
  %s18 = scalar_select 0, %s17, %s15
  %19 = sst [smem:[#allocation3]] %s0
  %v20 = vstv %s13
  %21 = vst [vmem:[#allocation4] sm:$0x1] %v20
  // Predicated region
  $region2: #{tpu_custom_call.1} parent=0 // pred_check
    _
  $region3: #{tpu_custom_call.1} parent=0 // pred_check_branch
    %23 = sbr.rel (0) target = $region5
  $region4: #{tpu_custom_call.1} parent=0 // pred_region
    _
  $region5: #{tpu_custom_call.1} parent=0 // pred_fallthru
    _
  // Predicated region
  $region6: #{tpu_custom_call.1} parent=0 // pred_check
    _
  $region7: #{tpu_custom_call.1} parent=0 // pred_check_branch
    %25 = sbr.rel (0) target = $region9
  $region8: #{tpu_custom_call.1} parent=0 // pred_region
    _
  $region9: #{tpu_custom_call.1} parent=0 // pred_fallthru
    _
  // Predicated region
  $region10: #{tpu_custom_call.1} parent=0 // pred_check
    _
  $region11: #{tpu_custom_call.1} parent=0 // pred_check_branch
    %27 = sbr.rel (0) target = $region13
  $region12: #{tpu_custom_call.1} parent=0 // pred_region
    _
  $region13: #{tpu_custom_call.1} parent=0 // pred_fallthru
    _
  // Predicated region
  $region14: #{tpu_custom_call.1} parent=0 // pred_check
    _
  $region15: #{tpu_custom_call.1} parent=0 // pred_check_branch
    %29 = sbr.rel (0) target = $region17
  $region16: #{tpu_custom_call.1} parent=0 // pred_region
    _
  $region17: #{tpu_custom_call.1} parent=0 // pred_fallthru
    _
  // Predicated region
  $region18: #{tpu_custom_call.1} parent=0 // pred_check
    _
  $region19: #{tpu_custom_call.1} parent=0 // pred_check_branch
    %31 = sbr.rel (0) target = $region21
  $region20: #{tpu_custom_call.1} parent=0 // pred_region
    _
  $region21: #{tpu_custom_call.1} parent=0 // pred_fallthru
    _
  // Predicated region
  $region22: #{tpu_custom_call.1} parent=0 // pred_check
    _
  $region23: #{tpu_custom_call.1} parent=0 // pred_check_branch
    %33 = sbr.rel (0) target = $region25
  $region24: #{tpu_custom_call.1} parent=0 // pred_region
    _
  $region25: #{tpu_custom_call.1} parent=0 // pred_fallthru
    _
  // Predicated region
  $region26: #{tpu_custom_call.1} parent=0 // pred_check
    _
  $region27: #{tpu_custom_call.1} parent=0 // pred_check_branch
    %35 = sbr.rel (0) target = $region29
  $region28: #{tpu_custom_call.1} parent=0 // pred_region
    _
  $region29: #{tpu_custom_call.1} parent=0 // pred_fallthru
    _
  // Predicated region
  $region30: #{tpu_custom_call.1} parent=0 // pred_check
    _
  $region31: #{tpu_custom_call.1} parent=0 // pred_check_branch
    %37 = sbr.rel (0) target = $region33
  $region32: #{tpu_custom_call.1} parent=0 // pred_region
    _
  $region33: #{tpu_custom_call.1} parent=0 // pred_fallthru
    _
  // Predicated region
  $region34: #{tpu_custom_call.1} parent=0 // pred_check
    _
  $region35: #{tpu_custom_call.1} parent=0 // pred_check_branch
    %39 = sbr.rel (0) target = $region37
  $region36: #{tpu_custom_call.1} parent=0 // pred_region
    _
  $region37: #{tpu_custom_call.1} parent=0 // pred_fallthru
    _
  // Predicated region
  $region38: #{tpu_custom_call.1} parent=0 // pred_check
    _
  $region39: #{tpu_custom_call.1} parent=0 // pred_check_branch
    %41 = sbr.rel (0) target = $region41
  $region40: #{tpu_custom_call.1} parent=0 // pred_region
    _
  $region41: #{tpu_custom_call.1} parent=0 // pred_fallthru
    _
  // Predicated region
  $region42: #{tpu_custom_call.1} parent=0 // pred_check
    _
  $region43: #{tpu_custom_call.1} parent=0 // pred_check_branch
    %43 = sbr.rel (0) target = $region45
  $region44: #{tpu_custom_call.1} parent=0 // pred_region
    _
  $region45: #{tpu_custom_call.1} parent=0 // pred_fallthru
    _
  // Predicated region
  $region46: #{tpu_custom_call.1} parent=0 // pred_check
    _
  $region47: #{tpu_custom_call.1} parent=0 // pred_check_branch
    %45 = sbr.rel (0) target = $region49
  $region48: #{tpu_custom_call.1} parent=0 // pred_region
    _
  $region49: #{tpu_custom_call.1} parent=0 // pred_fallthru
    _
  // Predicated region
  $region50: #{tpu_custom_call.1} parent=0 // pred_check
    _
  $region51: #{tpu_custom_call.1} parent=0 // pred_check_branch
    %47 = sbr.rel (0) target = $region53
  $region52: #{tpu_custom_call.1} parent=0 // pred_region
    _
  $region53: #{tpu_custom_call.1} parent=0 // pred_fallthru
    _
  // Predicated region
  $region54: #{tpu_custom_call.1} parent=0 // pred_check
    _
  $region55: #{tpu_custom_call.1} parent=0 // pred_check_branch
    %49 = sbr.rel (0) target = $region57
  $region56: #{tpu_custom_call.1} parent=0 // pred_region
    _
  $region57: #{tpu_custom_call.1} parent=0 // pred_fallthru
    _
  %v50 = vld [vmem:[%s2] sm:$0xff]
  %v51 = vld [vmem:[%s2 + $0x8] sm:$0xff]
  %v52 = vld [vmem:[%s2 + $0x10] sm:$0xff]
  %v53 = vld [vmem:[%s2 + $0x18] sm:$0xff]
  %v54 = vld [vmem:[%s3] sm:$0x1]
  %v55 = vld [vmem:[%s4] sm:$0xff]
  %v56 = vld [vmem:[%s4 + $0x8] sm:$0xff]
  %v57 = vld [vmem:[%s5] sm:$0x1]
  %v58 = vld [vmem:[%s1] sm:$0x3]
  %v60 = vperm.slane %v54, 0
  %vm62 = vcmask 261120
  %v64 = vsel %vm62, %v58, 0
  %66 = vmatpush.msra.mxu0 0.0
  %67 = vmatpush.msra.mxu0 0.0
  %68 = vmatpush.msra.mxu0 0.0
  %69 = vmatpush.msra.mxu0 0.0
  %70 = vmatpush.msra.mxu0 0.0
  %71 = vmatpush.msra.mxu0 0.0
  %72 = vmatpush.msra.mxu0 0.0
  %73 = vmatpush.msra.mxu0 0.0
  %74 = vmatpush.msra.mxu0 0.0
  %75 = vmatpush.msra.mxu0 0.0
  %76 = vmatpush.msra.mxu0 0.0
  %77 = vmatpush.msra.mxu0 0.0
  %78 = vmatpush.msra.mxu0 %v53
  %79 = vmatpush.msra.mxu0 %v52
  %80 = vmatpush.msra.mxu0 %v51
  %81 = vmatpush.msra.mxu0 %v50
  %82 = vmatmul.f32.gmra.mxu0 %v64
  %v83 = vpop.f32.mrf.mxu0
  %v84 = vadd.f32 %v60, %v83
  %85 = vdwg.mxu0
  %v86 = vmul.f32 %v84, 0.5
  %v87 = vmul.f32 %v84, 0.70710677
  %v88 = vmul.f32 %v87, %v87
  %v89 = vmin.f32 16.0, %v88
  %v90 = vmul.f32 %v89, 2.1237322e-06
  %v91 = vadd.f32 %v90, 0.00028619796
  %v92 = vmul.f32 %v89, %v91
  %v93 = vadd.f32 %v92, 0.0036580483
  %v94 = vmul.f32 %v89, %v93
  %v95 = vadd.f32 %v94, 0.05243302
  %v96 = vmul.f32 %v89, %v95
  %v97 = vadd.f32 %v96, 0.18741608
  %v98 = vmul.f32 %v89, %v97
  %v99 = vadd.f32 %v98, 1.1283791
  %v100 = vmul.f32 %v87, %v99
  %v101 = vmul.f32 %v89, 3.8918573e-05
  %v102 = vadd.f32 %v101, 0.001143296
  %v103 = vmul.f32 %v89, %v102
  %v104 = vadd.f32 %v103, 0.014752088
  %v105 = vmul.f32 %v89, %v104
  %v106 = vadd.f32 %v105, 0.112945676
  %v107 = vmul.f32 %v89, %v106
  %v108 = vadd.f32 %v107, 0.4994258
  %v109 = vmul.f32 %v89, %v108
  %v110 = vadd.f32 %v109, 1.0
  %v111 = vrcp.pop %v110
  %v112 = vmul.f32 %v110, %v111
  %v113 = vsub.f32 1.0, %v112
  %v114 = vmul.f32 %v111, %v113
  %v115 = vadd.f32 %v111, %v114
  %vm116 = vweird.f32 %v110
  %vm117 = vweird.f32 %v111
  %vm118 = vmor %vm116, %vm117
  %v119 = vsel %vm118, %v111, %v115
  %v120 = vand.u32 2147483647, %v110
  %vm121 = vcmp.eq.f32.partialorder %v120, 8.507059e+37
  %v122 = vand.u32 %v110, 2147483648
  %v123 = vor.u32 1.1754944e-38, %v122
  %v124 = vsel %vm121, %v123, %v119
  %v125 = vmul.f32 %v100, %v124
  %v126 = vmin.f32 %v125, 1.0
  %v127 = vmax.f32 %v126, -1.0
  %v128 = vadd.f32 %v127, 1.0
  %v129 = vmul.f32 %v86, %v128
  %v131 = vperm.slane %v57, 0
  %vm133 = vcmask 130048
  %v135 = vsel %vm133, %v129, 0
  %137 = vmatpush.msra.mxu0 0.0
  %138 = vmatpush.msra.mxu0 0.0
  %139 = vmatpush.msra.mxu0 0.0
  %140 = vmatpush.msra.mxu0 0.0
  %141 = vmatpush.msra.mxu0 0.0
  %142 = vmatpush.msra.mxu0 0.0
  %143 = vmatpush.msra.mxu0 0.0
  %144 = vmatpush.msra.mxu0 0.0
  %145 = vmatpush.msra.mxu0 0.0
  %146 = vmatpush.msra.mxu0 0.0
  %147 = vmatpush.msra.mxu0 0.0
  %148 = vmatpush.msra.mxu0 0.0
  %149 = vmatpush.msra.mxu0 0.0
  %150 = vmatpush.msra.mxu0 0.0
  %151 = vmatpush.msra.mxu0 %v56
  %152 = vmatpush.msra.mxu0 %v55
  %153 = vmatmul.f32.gmra.mxu0 %v135
  %v154 = vpop.f32.mrf.mxu0
  %v155 = vadd.f32 %v131, %v154
  %156 = vdwg.mxu0
  %vm157 = vcmask 25600
  %158 = vst.msk [vmem:[#allocation2] sm:$0x3] %vm157, %v155
  %s159 = scalar_lea.vmem %s1, 2
  %v160 = vld [vmem:[%s159] sm:$0x3]
  %v162 = vsel %vm62, %v160, 0
  %164 = vmatpush.msra.mxu0 0.0
  %165 = vmatpush.msra.mxu0 0.0
  %166 = vmatpush.msra.mxu0 0.0
  %167 = vmatpush.msra.mxu0 0.0
  %168 = vmatpush.msra.mxu0 0.0
  %169 = vmatpush.msra.mxu0 0.0
  %170 = vmatpush.msra.mxu0 0.0
  %171 = vmatpush.msra.mxu0 0.0
  %172 = vmatpush.msra.mxu0 0.0
  %173 = vmatpush.msra.mxu0 0.0
  %174 = vmatpush.msra.mxu0 0.0
  %175 = vmatpush.msra.mxu0 0.0
  %176 = vmatpush.msra.mxu0 %v53
  %177 = vmatpush.msra.mxu0 %v52
  %178 = vmatpush.msra.mxu0 %v51
  %179 = vmatpush.msra.mxu0 %v50
  %180 = vmatmul.f32.gmra.mxu0 %v162
  %v181 = vpop.f32.mrf.mxu0
  %v182 = vadd.f32 %v60, %v181
  %183 = vdwg.mxu0
  %v184 = vmul.f32 %v182, 0.5
  %v185 = vmul.f32 %v182, 0.70710677
  %v186 = vmul.f32 %v185, %v185
  %v187 = vmin.f32 16.0, %v186
  %v188 = vmul.f32 %v187, 2.1237322e-06
  %v189 = vadd.f32 %v188, 0.00028619796
  %v190 = vmul.f32 %v187, %v189
  %v191 = vadd.f32 %v190, 0.0036580483
  %v192 = vmul.f32 %v187, %v191
  %v193 = vadd.f32 %v192, 0.05243302
  %v194 = vmul.f32 %v187, %v193
  %v195 = vadd.f32 %v194, 0.18741608
  %v196 = vmul.f32 %v187, %v195
  %v197 = vadd.f32 %v196, 1.1283791
  %v198 = vmul.f32 %v185, %v197
  %v199 = vmul.f32 %v187, 3.8918573e-05
  %v200 = vadd.f32 %v199, 0.001143296
  %v201 = vmul.f32 %v187, %v200
  %v202 = vadd.f32 %v201, 0.014752088
  %v203 = vmul.f32 %v187, %v202
  %v204 = vadd.f32 %v203, 0.112945676
  %v205 = vmul.f32 %v187, %v204
  %v206 = vadd.f32 %v205, 0.4994258
  %v207 = vmul.f32 %v187, %v206
  %v208 = vadd.f32 %v207, 1.0
  %v209 = vrcp.pop %v208
  %v210 = vmul.f32 %v208, %v209
  %v211 = vsub.f32 1.0, %v210
  %v212 = vmul.f32 %v209, %v211
  %v213 = vadd.f32 %v209, %v212
  %vm214 = vweird.f32 %v208
  %vm215 = vweird.f32 %v209
  %vm216 = vmor %vm214, %vm215
  %v217 = vsel %vm216, %v209, %v213
  %v218 = vand.u32 2147483647, %v208
  %vm219 = vcmp.eq.f32.partialorder %v218, 8.507059e+37
  %v220 = vand.u32 %v208, 2147483648
  %v221 = vor.u32 1.1754944e-38, %v220
  %v222 = vsel %vm219, %v221, %v217
  %v223 = vmul.f32 %v198, %v222
  %v224 = vmin.f32 %v223, 1.0
  %v225 = vmax.f32 %v224, -1.0
  %v226 = vadd.f32 %v225, 1.0
  %v227 = vmul.f32 %v184, %v226
  %v229 = vsel %vm133, %v227, 0
  %231 = vmatpush.msra.mxu0 0.0
  %232 = vmatpush.msra.mxu0 0.0
  %233 = vmatpush.msra.mxu0 0.0
  %234 = vmatpush.msra.mxu0 0.0
  %235 = vmatpush.msra.mxu0 0.0
  %236 = vmatpush.msra.mxu0 0.0
  %237 = vmatpush.msra.mxu0 0.0
  %238 = vmatpush.msra.mxu0 0.0
  %239 = vmatpush.msra.mxu0 0.0
  %240 = vmatpush.msra.mxu0 0.0
  %241 = vmatpush.msra.mxu0 0.0
  %242 = vmatpush.msra.mxu0 0.0
  %243 = vmatpush.msra.mxu0 0.0
  %244 = vmatpush.msra.mxu0 0.0
  %245 = vmatpush.msra.mxu0 %v56
  %246 = vmatpush.msra.mxu0 %v55
  %247 = vmatmul.f32.gmra.mxu0 %v229
  %v248 = vpop.f32.mrf.mxu0
  %v249 = vadd.f32 %v131, %v248
  %250 = vdwg.mxu0
  %252 = vrot.lane.b32.xlu0 %v249, 4
  %v253 = vpop.permute.xlu0 %252
  %vm255 = vcmask 58400
  %256 = vst.msk [vmem:[#allocation2] sm:$0x3] %vm255, %v253
  %s257 = scalar_lea.vmem %s1, 4
  %v258 = vld [vmem:[%s257] sm:$0x3]
  %v260 = vsel %vm62, %v258, 0
  %262 = vmatpush.msra.mxu0 0.0
  %263 = vmatpush.msra.mxu0 0.0
  %264 = vmatpush.msra.mxu0 0.0
  %265 = vmatpush.msra.mxu0 0.0
  %266 = vmatpush.msra.mxu0 0.0
  %267 = vmatpush.msra.mxu0 0.0
  %268 = vmatpush.msra.mxu0 0.0
  %269 = vmatpush.msra.mxu0 0.0
  %270 = vmatpush.msra.mxu0 0.0
  %271 = vmatpush.msra.mxu0 0.0
  %272 = vmatpush.msra.mxu0 0.0
  %273 = vmatpush.msra.mxu0 0.0
  %274 = vmatpush.msra.mxu0 %v53
  %275 = vmatpush.msra.mxu0 %v52
  %276 = vmatpush.msra.mxu0 %v51
  %277 = vmatpush.msra.mxu0 %v50
  %278 = vmatmul.f32.gmra.mxu0 %v260
  %v279 = vpop.f32.mrf.mxu0
  %v280 = vadd.f32 %v60, %v279
  %281 = vdwg.mxu0
  %v282 = vmul.f32 %v280, 0.5
  %v283 = vmul.f32 %v280, 0.70710677
  %v284 = vmul.f32 %v283, %v283
  %v285 = vmin.f32 16.0, %v284
  %v286 = vmul.f32 %v285, 2.1237322e-06
  %v287 = vadd.f32 %v286, 0.00028619796
  %v288 = vmul.f32 %v285, %v287
  %v289 = vadd.f32 %v288, 0.0036580483
  %v290 = vmul.f32 %v285, %v289
  %v291 = vadd.f32 %v290, 0.05243302
  %v292 = vmul.f32 %v285, %v291
  %v293 = vadd.f32 %v292, 0.18741608
  %v294 = vmul.f32 %v285, %v293
  %v295 = vadd.f32 %v294, 1.1283791
  %v296 = vmul.f32 %v283, %v295
  %v297 = vmul.f32 %v285, 3.8918573e-05
  %v298 = vadd.f32 %v297, 0.001143296
  %v299 = vmul.f32 %v285, %v298
  %v300 = vadd.f32 %v299, 0.014752088
  %v301 = vmul.f32 %v285, %v300
  %v302 = vadd.f32 %v301, 0.112945676
  %v303 = vmul.f32 %v285, %v302
  %v304 = vadd.f32 %v303, 0.4994258
  %v305 = vmul.f32 %v285, %v304
  %v306 = vadd.f32 %v305, 1.0
  %v307 = vrcp.pop %v306
  %v308 = vmul.f32 %v306, %v307
  %v309 = vsub.f32 1.0, %v308
  %v310 = vmul.f32 %v307, %v309
  %v311 = vadd.f32 %v307, %v310
  %vm312 = vweird.f32 %v306
  %vm313 = vweird.f32 %v307
  %vm314 = vmor %vm312, %vm313
  %v315 = vsel %vm314, %v307, %v311
  %v316 = vand.u32 2147483647, %v306
  %vm317 = vcmp.eq.f32.partialorder %v316, 8.507059e+37
  %v318 = vand.u32 %v306, 2147483648
  %v319 = vor.u32 1.1754944e-38, %v318
  %v320 = vsel %vm317, %v319, %v315
  %v321 = vmul.f32 %v296, %v320
  %v322 = vmin.f32 %v321, 1.0
  %v323 = vmax.f32 %v322, -1.0
  %v324 = vadd.f32 %v323, 1.0
  %v325 = vmul.f32 %v282, %v324
  %v327 = vsel %vm133, %v325, 0
  %329 = vmatpush.msra.mxu0 0.0
  %330 = vmatpush.msra.mxu0 0.0
  %331 = vmatpush.msra.mxu0 0.0
  %332 = vmatpush.msra.mxu0 0.0
  %333 = vmatpush.msra.mxu0 0.0
  %334 = vmatpush.msra.mxu0 0.0
  %335 = vmatpush.msra.mxu0 0.0
  %336 = vmatpush.msra.mxu0 0.0
  %337 = vmatpush.msra.mxu0 0.0
  %338 = vmatpush.msra.mxu0 0.0
  %339 = vmatpush.msra.mxu0 0.0
  %340 = vmatpush.msra.mxu0 0.0
  %341 = vmatpush.msra.mxu0 0.0
  %342 = vmatpush.msra.mxu0 0.0
  %343 = vmatpush.msra.mxu0 %v56
  %344 = vmatpush.msra.mxu0 %v55
  %345 = vmatmul.f32.gmra.mxu0 %v327
  %v346 = vpop.f32.mrf.mxu0
  %v347 = vadd.f32 %v131, %v346
  %348 = vdwg.mxu0
  %350 = vrot.lane.b32.xlu0 %v347, 8
  %v351 = vpop.permute.xlu0 %350
  %vm353 = vcmask 91200
  %354 = vst.msk [vmem:[#allocation2] sm:$0x3] %vm353, %v351
  %s355 = scalar_lea.vmem %s1, 6
  %v356 = vld [vmem:[%s355] sm:$0x3]
  %v358 = vsel %vm62, %v356, 0
  %360 = vmatpush.msra.mxu0 0.0
  %361 = vmatpush.msra.mxu0 0.0
  %362 = vmatpush.msra.mxu0 0.0
  %363 = vmatpush.msra.mxu0 0.0
  %364 = vmatpush.msra.mxu0 0.0
  %365 = vmatpush.msra.mxu0 0.0
  %366 = vmatpush.msra.mxu0 0.0
  %367 = vmatpush.msra.mxu0 0.0
  %368 = vmatpush.msra.mxu0 0.0
  %369 = vmatpush.msra.mxu0 0.0
  %370 = vmatpush.msra.mxu0 0.0
  %371 = vmatpush.msra.mxu0 0.0
  %372 = vmatpush.msra.mxu0 %v53
  %373 = vmatpush.msra.mxu0 %v52
  %374 = vmatpush.msra.mxu0 %v51
  %375 = vmatpush.msra.mxu0 %v50
  %376 = vmatmul.f32.gmra.mxu0 %v358
  %v377 = vpop.f32.mrf.mxu0
  %v378 = vadd.f32 %v60, %v377
  %379 = vdwg.mxu0
  %v380 = vmul.f32 %v378, 0.5
  %v381 = vmul.f32 %v378, 0.70710677
  %v382 = vmul.f32 %v381, %v381
  %v383 = vmin.f32 16.0, %v382
  %v384 = vmul.f32 %v383, 2.1237322e-06
  %v385 = vadd.f32 %v384, 0.00028619796
  %v386 = vmul.f32 %v383, %v385
  %v387 = vadd.f32 %v386, 0.0036580483
  %v388 = vmul.f32 %v383, %v387
  %v389 = vadd.f32 %v388, 0.05243302
  %v390 = vmul.f32 %v383, %v389
  %v391 = vadd.f32 %v390, 0.18741608
  %v392 = vmul.f32 %v383, %v391
  %v393 = vadd.f32 %v392, 1.1283791
  %v394 = vmul.f32 %v381, %v393
  %v395 = vmul.f32 %v383, 3.8918573e-05
  %v396 = vadd.f32 %v395, 0.001143296
  %v397 = vmul.f32 %v383, %v396
  %v398 = vadd.f32 %v397, 0.014752088
  %v399 = vmul.f32 %v383, %v398
  %v400 = vadd.f32 %v399, 0.112945676
  %v401 = vmul.f32 %v383, %v400
  %v402 = vadd.f32 %v401, 0.4994258
  %v403 = vmul.f32 %v383, %v402
  %v404 = vadd.f32 %v403, 1.0
  %v405 = vrcp.pop %v404
  %v406 = vmul.f32 %v404, %v405
  %v407 = vsub.f32 1.0, %v406
  %v408 = vmul.f32 %v405, %v407
  %v409 = vadd.f32 %v405, %v408
  %vm410 = vweird.f32 %v404
  %vm411 = vweird.f32 %v405
  %vm412 = vmor %vm410, %vm411
  %v413 = vsel %vm412, %v405, %v409
  %v414 = vand.u32 2147483647, %v404
  %vm415 = vcmp.eq.f32.partialorder %v414, 8.507059e+37
  %v416 = vand.u32 %v404, 2147483648
  %v417 = vor.u32 1.1754944e-38, %v416
  %v418 = vsel %vm415, %v417, %v413
  %v419 = vmul.f32 %v394, %v418
  %v420 = vmin.f32 %v419, 1.0
  %v421 = vmax.f32 %v420, -1.0
  %v422 = vadd.f32 %v421, 1.0
  %v423 = vmul.f32 %v380, %v422
  %v425 = vsel %vm133, %v423, 0
  %427 = vmatpush.msra.mxu0 0.0
  %428 = vmatpush.msra.mxu0 0.0
  %429 = vmatpush.msra.mxu0 0.0
  %430 = vmatpush.msra.mxu0 0.0
  %431 = vmatpush.msra.mxu0 0.0
  %432 = vmatpush.msra.mxu0 0.0
  %433 = vmatpush.msra.mxu0 0.0
  %434 = vmatpush.msra.mxu0 0.0
  %435 = vmatpush.msra.mxu0 0.0
  %436 = vmatpush.msra.mxu0 0.0
  %437 = vmatpush.msra.mxu0 0.0
  %438 = vmatpush.msra.mxu0 0.0
  %439 = vmatpush.msra.mxu0 0.0
  %440 = vmatpush.msra.mxu0 0.0
  %441 = vmatpush.msra.mxu0 %v56
  %442 = vmatpush.msra.mxu0 %v55
  %443 = vmatmul.f32.gmra.mxu0 %v425
  %v444 = vpop.f32.mrf.mxu0
  %v445 = vadd.f32 %v131, %v444
  %446 = vdwg.mxu0
  %448 = vrot.lane.b32.xlu0 %v445, 12
  %v449 = vpop.permute.xlu0 %448
  %vm451 = vcmask 124000
  %452 = vst.msk [vmem:[#allocation2] sm:$0x3] %vm451, %v449
  %s453 = scalar_lea.vmem %s1, 8
  %v454 = vld [vmem:[%s453] sm:$0x3]
  %v456 = vsel %vm62, %v454, 0
  %458 = vmatpush.msra.mxu0 0.0
  %459 = vmatpush.msra.mxu0 0.0
  %460 = vmatpush.msra.mxu0 0.0
  %461 = vmatpush.msra.mxu0 0.0
  %462 = vmatpush.msra.mxu0 0.0
  %463 = vmatpush.msra.mxu0 0.0
  %464 = vmatpush.msra.mxu0 0.0
  %465 = vmatpush.msra.mxu0 0.0
  %466 = vmatpush.msra.mxu0 0.0
  %467 = vmatpush.msra.mxu0 0.0
  %468 = vmatpush.msra.mxu0 0.0
  %469 = vmatpush.msra.mxu0 0.0
  %470 = vmatpush.msra.mxu0 %v53
  %471 = vmatpush.msra.mxu0 %v52
  %472 = vmatpush.msra.mxu0 %v51
  %473 = vmatpush.msra.mxu0 %v50
  %474 = vmatmul.f32.gmra.mxu0 %v456
  %v475 = vpop.f32.mrf.mxu0
  %v476 = vadd.f32 %v60, %v475
  %477 = vdwg.mxu0
  %v478 = vmul.f32 %v476, 0.5
  %v479 = vmul.f32 %v476, 0.70710677
  %v480 = vmul.f32 %v479, %v479
  %v481 = vmin.f32 16.0, %v480
  %v482 = vmul.f32 %v481, 2.1237322e-06
  %v483 = vadd.f32 %v482, 0.00028619796
  %v484 = vmul.f32 %v481, %v483
  %v485 = vadd.f32 %v484, 0.0036580483
  %v486 = vmul.f32 %v481, %v485
  %v487 = vadd.f32 %v486, 0.05243302
  %v488 = vmul.f32 %v481, %v487
  %v489 = vadd.f32 %v488, 0.18741608
  %v490 = vmul.f32 %v481, %v489
  %v491 = vadd.f32 %v490, 1.1283791
  %v492 = vmul.f32 %v479, %v491
  %v493 = vmul.f32 %v481, 3.8918573e-05
  %v494 = vadd.f32 %v493, 0.001143296
  %v495 = vmul.f32 %v481, %v494
  %v496 = vadd.f32 %v495, 0.014752088
  %v497 = vmul.f32 %v481, %v496
  %v498 = vadd.f32 %v497, 0.112945676
  %v499 = vmul.f32 %v481, %v498
  %v500 = vadd.f32 %v499, 0.4994258
  %v501 = vmul.f32 %v481, %v500
  %v502 = vadd.f32 %v501, 1.0
  %v503 = vrcp.pop %v502
  %v504 = vmul.f32 %v502, %v503
  %v505 = vsub.f32 1.0, %v504
  %v506 = vmul.f32 %v503, %v505
  %v507 = vadd.f32 %v503, %v506
  %vm508 = vweird.f32 %v502
  %vm509 = vweird.f32 %v503
  %vm510 = vmor %vm508, %vm509
  %v511 = vsel %vm510, %v503, %v507
  %v512 = vand.u32 2147483647, %v502
  %vm513 = vcmp.eq.f32.partialorder %v512, 8.507059e+37
  %v514 = vand.u32 %v502, 2147483648
  %v515 = vor.u32 1.1754944e-38, %v514
  %v516 = vsel %vm513, %v515, %v511
  %v517 = vmul.f32 %v492, %v516
  %v518 = vmin.f32 %v517, 1.0
  %v519 = vmax.f32 %v518, -1.0
  %v520 = vadd.f32 %v519, 1.0
  %v521 = vmul.f32 %v478, %v520
  %v523 = vsel %vm133, %v521, 0
  %525 = vmatpush.msra.mxu0 0.0
  %526 = vmatpush.msra.mxu0 0.0
  %527 = vmatpush.msra.mxu0 0.0
  %528 = vmatpush.msra.mxu0 0.0
  %529 = vmatpush.msra.mxu0 0.0
  %530 = vmatpush.msra.mxu0 0.0
  %531 = vmatpush.msra.mxu0 0.0
  %532 = vmatpush.msra.mxu0 0.0
  %533 = vmatpush.msra.mxu0 0.0
  %534 = vmatpush.msra.mxu0 0.0
  %535 = vmatpush.msra.mxu0 0.0
  %536 = vmatpush.msra.mxu0 0.0
  %537 = vmatpush.msra.mxu0 0.0
  %538 = vmatpush.msra.mxu0 0.0
  %539 = vmatpush.msra.mxu0 %v56
  %540 = vmatpush.msra.mxu0 %v55
  %541 = vmatmul.f32.gmra.mxu0 %v523
  %v542 = vpop.f32.mrf.mxu0
  %v543 = vadd.f32 %v131, %v542
  %544 = vdwg.mxu0
  %546 = vrot.lane.b32.xlu0 %v543, 16
  %v547 = vpop.permute.xlu0 %546
  %vm549 = vcmask 156800
  %550 = vst.msk [vmem:[#allocation2] sm:$0x3] %vm549, %v547
  %s551 = scalar_lea.vmem %s1, 10
  %v552 = vld [vmem:[%s551] sm:$0x3]
  %v554 = vsel %vm62, %v552, 0
  %556 = vmatpush.msra.mxu0 0.0
  %557 = vmatpush.msra.mxu0 0.0
  %558 = vmatpush.msra.mxu0 0.0
  %559 = vmatpush.msra.mxu0 0.0
  %560 = vmatpush.msra.mxu0 0.0
  %561 = vmatpush.msra.mxu0 0.0
  %562 = vmatpush.msra.mxu0 0.0
  %563 = vmatpush.msra.mxu0 0.0
  %564 = vmatpush.msra.mxu0 0.0
  %565 = vmatpush.msra.mxu0 0.0
  %566 = vmatpush.msra.mxu0 0.0
  %567 = vmatpush.msra.mxu0 0.0
  %568 = vmatpush.msra.mxu0 %v53
  %569 = vmatpush.msra.mxu0 %v52
  %570 = vmatpush.msra.mxu0 %v51
  %571 = vmatpush.msra.mxu0 %v50
  %572 = vmatmul.f32.gmra.mxu0 %v554
  %v573 = vpop.f32.mrf.mxu0
  %v574 = vadd.f32 %v60, %v573
  %575 = vdwg.mxu0
  %v576 = vmul.f32 %v574, 0.5
  %v577 = vmul.f32 %v574, 0.70710677
  %v578 = vmul.f32 %v577, %v577
  %v579 = vmin.f32 16.0, %v578
  %v580 = vmul.f32 %v579, 2.1237322e-06
  %v581 = vadd.f32 %v580, 0.00028619796
  %v582 = vmul.f32 %v579, %v581
  %v583 = vadd.f32 %v582, 0.0036580483
  %v584 = vmul.f32 %v579, %v583
  %v585 = vadd.f32 %v584, 0.05243302
  %v586 = vmul.f32 %v579, %v585
  %v587 = vadd.f32 %v586, 0.18741608
  %v588 = vmul.f32 %v579, %v587
  %v589 = vadd.f32 %v588, 1.1283791
  %v590 = vmul.f32 %v577, %v589
  %v591 = vmul.f32 %v579, 3.8918573e-05
  %v592 = vadd.f32 %v591, 0.001143296
  %v593 = vmul.f32 %v579, %v592
  %v594 = vadd.f32 %v593, 0.014752088
  %v595 = vmul.f32 %v579, %v594
  %v596 = vadd.f32 %v595, 0.112945676
  %v597 = vmul.f32 %v579, %v596
  %v598 = vadd.f32 %v597, 0.4994258
  %v599 = vmul.f32 %v579, %v598
  %v600 = vadd.f32 %v599, 1.0
  %v601 = vrcp.pop %v600
  %v602 = vmul.f32 %v600, %v601
  %v603 = vsub.f32 1.0, %v602
  %v604 = vmul.f32 %v601, %v603
  %v605 = vadd.f32 %v601, %v604
  %vm606 = vweird.f32 %v600
  %vm607 = vweird.f32 %v601
  %vm608 = vmor %vm606, %vm607
  %v609 = vsel %vm608, %v601, %v605
  %v610 = vand.u32 2147483647, %v600
  %vm611 = vcmp.eq.f32.partialorder %v610, 8.507059e+37
  %v612 = vand.u32 %v600, 2147483648
  %v613 = vor.u32 1.1754944e-38, %v612
  %v614 = vsel %vm611, %v613, %v609
  %v615 = vmul.f32 %v590, %v614
  %v616 = vmin.f32 %v615, 1.0
  %v617 = vmax.f32 %v616, -1.0
  %v618 = vadd.f32 %v617, 1.0
  %v619 = vmul.f32 %v576, %v618
  %v621 = vsel %vm133, %v619, 0
  %623 = vmatpush.msra.mxu0 0.0
  %624 = vmatpush.msra.mxu0 0.0
  %625 = vmatpush.msra.mxu0 0.0
  %626 = vmatpush.msra.mxu0 0.0
  %627 = vmatpush.msra.mxu0 0.0
  %628 = vmatpush.msra.mxu0 0.0
  %629 = vmatpush.msra.mxu0 0.0
  %630 = vmatpush.msra.mxu0 0.0
  %631 = vmatpush.msra.mxu0 0.0
  %632 = vmatpush.msra.mxu0 0.0
  %633 = vmatpush.msra.mxu0 0.0
  %634 = vmatpush.msra.mxu0 0.0
  %635 = vmatpush.msra.mxu0 0.0
  %636 = vmatpush.msra.mxu0 0.0
  %637 = vmatpush.msra.mxu0 %v56
  %638 = vmatpush.msra.mxu0 %v55
  %639 = vmatmul.f32.gmra.mxu0 %v621
  %v640 = vpop.f32.mrf.mxu0
  %v641 = vadd.f32 %v131, %v640
  %642 = vdwg.mxu0
  %644 = vrot.lane.b32.xlu0 %v641, 20
  %v645 = vpop.permute.xlu0 %644
  %vm647 = vcmask 189600
  %648 = vst.msk [vmem:[#allocation2] sm:$0x3] %vm647, %v645
  %s649 = scalar_lea.vmem %s1, 12
  %v650 = vld [vmem:[%s649] sm:$0x3]
  %v652 = vsel %vm62, %v650, 0
  %654 = vmatpush.msra.mxu0 0.0
  %655 = vmatpush.msra.mxu0 0.0
  %656 = vmatpush.msra.mxu0 0.0
  %657 = vmatpush.msra.mxu0 0.0
  %658 = vmatpush.msra.mxu0 0.0
  %659 = vmatpush.msra.mxu0 0.0
  %660 = vmatpush.msra.mxu0 0.0
  %661 = vmatpush.msra.mxu0 0.0
  %662 = vmatpush.msra.mxu0 0.0
  %663 = vmatpush.msra.mxu0 0.0
  %664 = vmatpush.msra.mxu0 0.0
  %665 = vmatpush.msra.mxu0 0.0
  %666 = vmatpush.msra.mxu0 %v53
  %667 = vmatpush.msra.mxu0 %v52
  %668 = vmatpush.msra.mxu0 %v51
  %669 = vmatpush.msra.mxu0 %v50
  %670 = vmatmul.f32.gmra.mxu0 %v652
  %v671 = vpop.f32.mrf.mxu0
  %v672 = vadd.f32 %v60, %v671
  %673 = vdwg.mxu0
  %v674 = vmul.f32 %v672, 0.5
  %v675 = vmul.f32 %v672, 0.70710677
  %v676 = vmul.f32 %v675, %v675
  %v677 = vmin.f32 16.0, %v676
  %v678 = vmul.f32 %v677, 2.1237322e-06
  %v679 = vadd.f32 %v678, 0.00028619796
  %v680 = vmul.f32 %v677, %v679
  %v681 = vadd.f32 %v680, 0.0036580483
  %v682 = vmul.f32 %v677, %v681
  %v683 = vadd.f32 %v682, 0.05243302
  %v684 = vmul.f32 %v677, %v683
  %v685 = vadd.f32 %v684, 0.18741608
  %v686 = vmul.f32 %v677, %v685
  %v687 = vadd.f32 %v686, 1.1283791
  %v688 = vmul.f32 %v675, %v687
  %v689 = vmul.f32 %v677, 3.8918573e-05
  %v690 = vadd.f32 %v689, 0.001143296
  %v691 = vmul.f32 %v677, %v690
  %v692 = vadd.f32 %v691, 0.014752088
  %v693 = vmul.f32 %v677, %v692
  %v694 = vadd.f32 %v693, 0.112945676
  %v695 = vmul.f32 %v677, %v694
  %v696 = vadd.f32 %v695, 0.4994258
  %v697 = vmul.f32 %v677, %v696
  %v698 = vadd.f32 %v697, 1.0
  %v699 = vrcp.pop %v698
  %v700 = vmul.f32 %v698, %v699
  %v701 = vsub.f32 1.0, %v700
  %v702 = vmul.f32 %v699, %v701
  %v703 = vadd.f32 %v699, %v702
  %vm704 = vweird.f32 %v698
  %vm705 = vweird.f32 %v699
  %vm706 = vmor %vm704, %vm705
  %v707 = vsel %vm706, %v699, %v703
  %v708 = vand.u32 2147483647, %v698
  %vm709 = vcmp.eq.f32.partialorder %v708, 8.507059e+37
  %v710 = vand.u32 %v698, 2147483648
  %v711 = vor.u32 1.1754944e-38, %v710
  %v712 = vsel %vm709, %v711, %v707
  %v713 = vmul.f32 %v688, %v712
  %v714 = vmin.f32 %v713, 1.0
  %v715 = vmax.f32 %v714, -1.0
  %v716 = vadd.f32 %v715, 1.0
  %v717 = vmul.f32 %v674, %v716
  %v719 = vsel %vm133, %v717, 0
  %721 = vmatpush.msra.mxu0 0.0
  %722 = vmatpush.msra.mxu0 0.0
  %723 = vmatpush.msra.mxu0 0.0
  %724 = vmatpush.msra.mxu0 0.0
  %725 = vmatpush.msra.mxu0 0.0
  %726 = vmatpush.msra.mxu0 0.0
  %727 = vmatpush.msra.mxu0 0.0
  %728 = vmatpush.msra.mxu0 0.0
  %729 = vmatpush.msra.mxu0 0.0
  %730 = vmatpush.msra.mxu0 0.0
  %731 = vmatpush.msra.mxu0 0.0
  %732 = vmatpush.msra.mxu0 0.0
  %733 = vmatpush.msra.mxu0 0.0
  %734 = vmatpush.msra.mxu0 0.0
  %735 = vmatpush.msra.mxu0 %v56
  %736 = vmatpush.msra.mxu0 %v55
  %737 = vmatmul.f32.gmra.mxu0 %v719
  %v738 = vpop.f32.mrf.mxu0
  %v739 = vadd.f32 %v131, %v738
  %740 = vdwg.mxu0
  %742 = vrot.lane.b32.xlu0 %v739, 24
  %v743 = vpop.permute.xlu0 %742
  %vm745 = vcmask 222400
  %746 = vst.msk [vmem:[#allocation2] sm:$0x3] %vm745, %v743
  %s747 = scalar_lea.vmem %s1, 14
  %v748 = vld [vmem:[%s747] sm:$0x3]
  %v750 = vsel %vm62, %v748, 0
  %752 = vmatpush.msra.mxu0 0.0
  %753 = vmatpush.msra.mxu0 0.0
  %754 = vmatpush.msra.mxu0 0.0
  %755 = vmatpush.msra.mxu0 0.0
  %756 = vmatpush.msra.mxu0 0.0
  %757 = vmatpush.msra.mxu0 0.0
  %758 = vmatpush.msra.mxu0 0.0
  %759 = vmatpush.msra.mxu0 0.0
  %760 = vmatpush.msra.mxu0 0.0
  %761 = vmatpush.msra.mxu0 0.0
  %762 = vmatpush.msra.mxu0 0.0
  %763 = vmatpush.msra.mxu0 0.0
  %764 = vmatpush.msra.mxu0 %v53
  %765 = vmatpush.msra.mxu0 %v52
  %766 = vmatpush.msra.mxu0 %v51
  %767 = vmatpush.msra.mxu0 %v50
  %768 = vmatmul.f32.gmra.mxu0 %v750
  %v769 = vpop.f32.mrf.mxu0
  %v770 = vadd.f32 %v60, %v769
  %771 = vdwg.mxu0
  %v772 = vmul.f32 %v770, 0.5
  %v773 = vmul.f32 %v770, 0.70710677
  %v774 = vmul.f32 %v773, %v773
  %v775 = vmin.f32 16.0, %v774
  %v776 = vmul.f32 %v775, 2.1237322e-06
  %v777 = vadd.f32 %v776, 0.00028619796
  %v778 = vmul.f32 %v775, %v777
  %v779 = vadd.f32 %v778, 0.0036580483
  %v780 = vmul.f32 %v775, %v779
  %v781 = vadd.f32 %v780, 0.05243302
  %v782 = vmul.f32 %v775, %v781
  %v783 = vadd.f32 %v782, 0.18741608
  %v784 = vmul.f32 %v775, %v783
  %v785 = vadd.f32 %v784, 1.1283791
  %v786 = vmul.f32 %v773, %v785
  %v787 = vmul.f32 %v775, 3.8918573e-05
  %v788 = vadd.f32 %v787, 0.001143296
  %v789 = vmul.f32 %v775, %v788
  %v790 = vadd.f32 %v789, 0.014752088
  %v791 = vmul.f32 %v775, %v790
  %v792 = vadd.f32 %v791, 0.112945676
  %v793 = vmul.f32 %v775, %v792
  %v794 = vadd.f32 %v793, 0.4994258
  %v795 = vmul.f32 %v775, %v794
  %v796 = vadd.f32 %v795, 1.0
  %v797 = vrcp.pop %v796
  %v798 = vmul.f32 %v796, %v797
  %v799 = vsub.f32 1.0, %v798
  %v800 = vmul.f32 %v797, %v799
  %v801 = vadd.f32 %v797, %v800
  %vm802 = vweird.f32 %v796
  %vm803 = vweird.f32 %v797
  %vm804 = vmor %vm802, %vm803
  %v805 = vsel %vm804, %v797, %v801
  %v806 = vand.u32 2147483647, %v796
  %vm807 = vcmp.eq.f32.partialorder %v806, 8.507059e+37
  %v808 = vand.u32 %v796, 2147483648
  %v809 = vor.u32 1.1754944e-38, %v808
  %v810 = vsel %vm807, %v809, %v805
  %v811 = vmul.f32 %v786, %v810
  %v812 = vmin.f32 %v811, 1.0
  %v813 = vmax.f32 %v812, -1.0
  %v814 = vadd.f32 %v813, 1.0
  %v815 = vmul.f32 %v772, %v814
  %v817 = vsel %vm133, %v815, 0
  %819 = vmatpush.msra.mxu0 0.0
  %820 = vmatpush.msra.mxu0 0.0
  %821 = vmatpush.msra.mxu0 0.0
  %822 = vmatpush.msra.mxu0 0.0
  %823 = vmatpush.msra.mxu0 0.0
  %824 = vmatpush.msra.mxu0 0.0
  %825 = vmatpush.msra.mxu0 0.0
  %826 = vmatpush.msra.mxu0 0.0
  %827 = vmatpush.msra.mxu0 0.0
  %828 = vmatpush.msra.mxu0 0.0
  %829 = vmatpush.msra.mxu0 0.0
  %830 = vmatpush.msra.mxu0 0.0
  %831 = vmatpush.msra.mxu0 0.0
  %832 = vmatpush.msra.mxu0 0.0
  %833 = vmatpush.msra.mxu0 %v56
  %834 = vmatpush.msra.mxu0 %v55
  %835 = vmatmul.f32.gmra.mxu0 %v817
  %v836 = vpop.f32.mrf.mxu0
  %v837 = vadd.f32 %v131, %v836
  %838 = vdwg.mxu0
  %840 = vrot.lane.b32.xlu0 %v837, 28
  %v841 = vpop.permute.xlu0 %840
  %vm843 = vcmask 255200
  %844 = vst.msk [vmem:[#allocation2] sm:$0x3] %vm843, %v841
  %v845 = vld [vmem:[#allocation2] sm:$0x3]
  %v846 = vld [vmem:[%s6] sm:$0xff]
  %v847 = vld [vmem:[%s6 + $0x8] sm:$0xff]
  %v848 = vld [vmem:[%s6 + $0x10] sm:$0xff]
  %v849 = vld [vmem:[%s6 + $0x18] sm:$0xff]
  %v850 = vld [vmem:[%s7] sm:$0x1]
  %v852 = vperm.slane %v850, 0
  %v855 = vsel %vm62, %v845, 0
  %857 = vmatpush.msra.mxu0 0.0
  %858 = vmatpush.msra.mxu0 0.0
  %859 = vmatpush.msra.mxu0 0.0
  %860 = vmatpush.msra.mxu0 0.0
  %861 = vmatpush.msra.mxu0 0.0
  %862 = vmatpush.msra.mxu0 0.0
  %863 = vmatpush.msra.mxu0 0.0
  %864 = vmatpush.msra.mxu0 0.0
  %865 = vmatpush.msra.mxu0 0.0
  %866 = vmatpush.msra.mxu0 0.0
  %867 = vmatpush.msra.mxu0 0.0
  %868 = vmatpush.msra.mxu0 0.0
  %869 = vmatpush.msra.mxu0 %v849
  %870 = vmatpush.msra.mxu0 %v848
  %871 = vmatpush.msra.mxu0 %v847
  %872 = vmatpush.msra.mxu0 %v846
  %873 = vmatmul.f32.gmra.mxu0 %v855
  %v874 = vpop.f32.mrf.mxu0
  %v875 = vadd.f32 %v852, %v874
  %876 = vdwg.mxu0
  %v877 = vmul.f32 %v875, 0.5
  %v878 = vmul.f32 %v875, 0.70710677
  %v879 = vmul.f32 %v878, %v878
  %v880 = vmin.f32 16.0, %v879
  %v881 = vmul.f32 %v880, 2.1237322e-06
  %v882 = vadd.f32 %v881, 0.00028619796
  %v883 = vmul.f32 %v880, %v882
  %v884 = vadd.f32 %v883, 0.0036580483
  %v885 = vmul.f32 %v880, %v884
  %v886 = vadd.f32 %v885, 0.05243302
  %v887 = vmul.f32 %v880, %v886
  %v888 = vadd.f32 %v887, 0.18741608
  %v889 = vmul.f32 %v880, %v888
  %v890 = vadd.f32 %v889, 1.1283791
  %v891 = vmul.f32 %v878, %v890
  %v892 = vmul.f32 %v880, 3.8918573e-05
  %v893 = vadd.f32 %v892, 0.001143296
  %v894 = vmul.f32 %v880, %v893
  %v895 = vadd.f32 %v894, 0.014752088
  %v896 = vmul.f32 %v880, %v895
  %v897 = vadd.f32 %v896, 0.112945676
  %v898 = vmul.f32 %v880, %v897
  %v899 = vadd.f32 %v898, 0.4994258
  %v900 = vmul.f32 %v880, %v899
  %v901 = vadd.f32 %v900, 1.0
  %v902 = vrcp.pop %v901
  %v903 = vmul.f32 %v901, %v902
  %v904 = vsub.f32 1.0, %v903
  %v905 = vmul.f32 %v902, %v904
  %v906 = vadd.f32 %v902, %v905
  %vm907 = vweird.f32 %v901
  %vm908 = vweird.f32 %v902
  %vm909 = vmor %vm907, %vm908
  %v910 = vsel %vm909, %v902, %v906
  %v911 = vand.u32 2147483647, %v901
  %vm912 = vcmp.eq.f32.partialorder %v911, 8.507059e+37
  %v913 = vand.u32 %v901, 2147483648
  %v914 = vor.u32 1.1754944e-38, %v913
  %v915 = vsel %vm912, %v914, %v910
  %v916 = vmul.f32 %v891, %v915
  %v917 = vmin.f32 %v916, 1.0
  %v918 = vmax.f32 %v917, -1.0
  %v919 = vadd.f32 %v918, 1.0
  %v920 = vmul.f32 %v877, %v919
  %v921 = vld [vmem:[%s8] sm:$0xff]
  %v922 = vld [vmem:[%s8 + $0x8] sm:$0xff]
  %v923 = vld [vmem:[%s9] sm:$0x1]
  %v925 = vperm.slane %v923, 0
  %v928 = vsel %vm133, %v920, 0
  %930 = vmatpush.msra.mxu0 0.0
  %931 = vmatpush.msra.mxu0 0.0
  %932 = vmatpush.msra.mxu0 0.0
  %933 = vmatpush.msra.mxu0 0.0
  %934 = vmatpush.msra.mxu0 0.0
  %935 = vmatpush.msra.mxu0 0.0
  %936 = vmatpush.msra.mxu0 0.0
  %937 = vmatpush.msra.mxu0 0.0
  %938 = vmatpush.msra.mxu0 0.0
  %939 = vmatpush.msra.mxu0 0.0
  %940 = vmatpush.msra.mxu0 0.0
  %941 = vmatpush.msra.mxu0 0.0
  %942 = vmatpush.msra.mxu0 0.0
  %943 = vmatpush.msra.mxu0 0.0
  %944 = vmatpush.msra.mxu0 %v922
  %945 = vmatpush.msra.mxu0 %v921
  %946 = vmatmul.f32.gmra.mxu0 %v928
  %v947 = vpop.f32.mrf.mxu0
  %v948 = vadd.f32 %v925, %v947
  %949 = vdwg.mxu0
  %v950 = vld [vmem:[%s10] sm:$0xf]
  %v951 = vld [vmem:[%s11] sm:$0x1]
  %v953 = vperm.slane %v951, 0
  %vm955 = vcmask 31744
  %v957 = vsel %vm955, %v948, 0
  %vm959 = vcmask 1043456
  %v961 = vsel %vm959, %v950, 0
  %963 = vmatpush.msra.mxu0 0.0
  %964 = vmatpush.msra.mxu0 0.0
  %965 = vmatpush.msra.mxu0 0.0
  %966 = vmatpush.msra.mxu0 0.0
  %967 = vmatpush.msra.mxu0 0.0
  %968 = vmatpush.msra.mxu0 0.0
  %969 = vmatpush.msra.mxu0 0.0
  %970 = vmatpush.msra.mxu0 0.0
  %971 = vmatpush.msra.mxu0 0.0
  %972 = vmatpush.msra.mxu0 0.0
  %973 = vmatpush.msra.mxu0 0.0
  %974 = vmatpush.msra.mxu0 0.0
  %975 = vmatpush.msra.mxu0 0.0
  %976 = vmatpush.msra.mxu0 0.0
  %977 = vmatpush.msra.mxu0 0.0
  %978 = vmatpush.msra.mxu0 %v961
  %979 = vmatmul.f32.gmra.mxu0 %v957
  %v980 = vpop.f32.mrf.mxu0
  %v981 = vadd.f32 %v953, %v980
  %982 = vdwg.mxu0
  %v983 = vmul.f32 %v981, 0.5
  %v984 = vmul.f32 %v981, 0.70710677
  %v985 = vmul.f32 %v984, %v984
  %v986 = vmin.f32 16.0, %v985
  %v987 = vmul.f32 %v986, 2.1237322e-06
  %v988 = vadd.f32 %v987, 0.00028619796
  %v989 = vmul.f32 %v986, %v988
  %v990 = vadd.f32 %v989, 0.0036580483
  %v991 = vmul.f32 %v986, %v990
  %v992 = vadd.f32 %v991, 0.05243302
  %v993 = vmul.f32 %v986, %v992
  %v994 = vadd.f32 %v993, 0.18741608
  %v995 = vmul.f32 %v986, %v994
  %v996 = vadd.f32 %v995, 1.1283791
  %v997 = vmul.f32 %v984, %v996
  %v998 = vmul.f32 %v986, 3.8918573e-05
  %v999 = vadd.f32 %v998, 0.001143296
  %v1000 = vmul.f32 %v986, %v999
  %v1001 = vadd.f32 %v1000, 0.014752088
  %v1002 = vmul.f32 %v986, %v1001
  %v1003 = vadd.f32 %v1002, 0.112945676
  %v1004 = vmul.f32 %v986, %v1003
  %v1005 = vadd.f32 %v1004, 0.4994258
  %v1006 = vmul.f32 %v986, %v1005
  %v1007 = vadd.f32 %v1006, 1.0
  %v1008 = vrcp.pop %v1007
  %v1009 = vmul.f32 %v1007, %v1008
  %v1010 = vsub.f32 1.0, %v1009
  %v1011 = vmul.f32 %v1008, %v1010
  %v1012 = vadd.f32 %v1008, %v1011
  %vm1013 = vweird.f32 %v1007
  %vm1014 = vweird.f32 %v1008
  %vm1015 = vmor %vm1013, %vm1014
  %v1016 = vsel %vm1015, %v1008, %v1012
  %v1017 = vand.u32 2147483647, %v1007
  %vm1018 = vcmp.eq.f32.partialorder %v1017, 8.507059e+37
  %v1019 = vand.u32 %v1007, 2147483648
  %v1020 = vor.u32 1.1754944e-38, %v1019
  %v1021 = vsel %vm1018, %v1020, %v1016
  %v1022 = vmul.f32 %v997, %v1021
  %v1023 = vmin.f32 %v1022, 1.0
  %v1024 = vmax.f32 %v1023, -1.0
  %v1025 = vadd.f32 %v1024, 1.0
  %v1026 = vmul.f32 %v983, %v1025
  %v1027 = vld [vmem:[%s12] sm:$0x1]
  %v1029 = vperm.slane %v1027, 0
  %v1031 = vmul.f32 %v1026, %v1029
  %vm1032 = vcmask 9216
  %v1033 = vsel %vm1032, %v1031, 0.0
  %1034 = vadd.xlane.f32.xlu0 %v1033
  %v1035 = vpop.xlane.xlu0 %1034
  %v1036 = vld [vmem:[#allocation4] sm:$0x1]
  %v1038 = vperm.slane %v1036, 0
  %v1040 = vadd.f32 %v1035, %v1038
  %s1041 = sld [smem:[#allocation3]]
  %v1042 = vmax.f32 %v1040, 0.0
  %v1043 = vstv %s1041
  %v1044 = vmul.f32 %v1040, %v1043
  %v1045 = vsub.f32 %v1042, %v1044
  %v1046 = vand.u32 2147483647, %v1040
  %v1047 = vsub.f32 0.0, %v1046
  %v1048 = vmul.f32 %v1047, 1.442695
  %v1049 = vpow.pop %v1048
  %v1050 = vadd.f32 %v1049, 1.0
  %v1051 = vlog2.pop %v1050
  %v1052 = vmul.f32 %v1051, 0.6931472
  %v1053 = vadd.f32 %v1045, %v1052
  %s1054 = smul.u32 0, 2
  %v1055 = vlaneseq
  %v1056 = vshrl.u32 %v1055, 7
  %v1057 = vstv %s1054
  %v1058 = vadd.s32 %v1057, %v1056
  %vm1059 = vcmp.lt.s32.totalorder %v1058, 2
  %v1060 = vsel %vm1059, %v1053, 0.0
  %vm1061 = vcmask 1024
  %1062 = vst.msk [vmem:[%s14] sm:$0x3] %vm1061, %v1060
  // Predicated region
  $region58: #{tpu_custom_call.1} parent=0 // pred_check
    _
  $region59: #{tpu_custom_call.1} parent=0 // pred_check_branch
    %1064 = sbr.rel (0) target = $region61
  $region60: #{tpu_custom_call.1} parent=0 // pred_region
    _
  $region61: #{tpu_custom_call.1} parent=0 // pred_fallthru
    _
  // Predicated region
  $region62: #{tpu_custom_call.1} parent=0 // pred_check
    _
  $region63: #{tpu_custom_call.1} parent=0 // pred_check_branch
    %1066 = sbr.rel (0) target = $region65
  $region64: #{tpu_custom_call.1} parent=0 // pred_region
    _
  $region65: #{tpu_custom_call.1} parent=0 // pred_fallthru
    _

</llo_original>
